<compile_context>
chip_gen: v7x
topology: tpu7x:2x2x1
jax: 0.10.0
libtpu: 0.0.40
codegen_flags: <defaults>
</compile_context>

<pallas_src>
import math
import functools

import jax
import jax.numpy as jnp
from jax.experimental import pallas as pl
from jax.experimental.pallas import tpu as pltpu


# ---------------------------------------------------------------------------
# Kernel
# ---------------------------------------------------------------------------

def _layer_norm(x, g, b, eps=1e-5):
    """LayerNorm over the last dim (matches torch.nn.LayerNorm, f32 math)."""
    mean = jnp.mean(x, axis=-1, keepdims=True)
    var = jnp.mean((x - mean) ** 2, axis=-1, keepdims=True)
    return (x - mean) * jax.lax.rsqrt(var + eps) * g + b


def fused_encoder_kernel(src_ref, pos_ref,
                         wqk_ref, wv_ref, wo_ref, w1_ref, w2_ref,
                         vec_ref, b1_ref, lnf_ref,
                         out_ref,
                         *, nhead, num_layers, has_final_norm):
    """One grid step = (one batch tile, one encoder layer).

    out_ref is the VMEM-resident carry: seeded from src at layer 0, rewritten
    every layer, written back to HBM only after the last layer of the tile.
    """
    layer = pl.program_id(1)

    # Layer 0: seed the carry with the input block.
    @pl.when(layer == 0)
    def _():
        out_ref[...] = src_ref[...]

    BT, S, D = out_ref.shape
    hd = D // nhead
    N = BT * S

    x = out_ref[...].astype(jnp.float32).reshape(N, D)            # carry (f32)
    pos = pos_ref[...].astype(jnp.float32).reshape(N, D)

    # Per-layer small vectors: rows = [bq*scale, bk, bv, bo, b2,
    #                                  ln1_g, ln1_b, ln2_g, ln2_b]
    vecs = vec_ref[0]                                             # (9, D) f32
    bq, bk, bv, bo, b2 = (vecs[i:i + 1, :] for i in range(5))
    ln1_g, ln1_b, ln2_g, ln2_b = (vecs[i:i + 1, :] for i in range(5, 9))

    qk_in = (x + pos).astype(jnp.bfloat16)                        # with_pos_embed
    x_bf = x.astype(jnp.bfloat16)

    # Fused Q/K projection: one (N, D) @ (D, 2D) matmul (scale folded in).
    qk = jnp.dot(qk_in, wqk_ref[0], preferred_element_type=jnp.float32)
    q = (qk[:, :D] + bq).reshape(BT, S, D).astype(jnp.bfloat16)
    k = (qk[:, D:] + bk).reshape(BT, S, D).astype(jnp.bfloat16)
    v = (jnp.dot(x_bf, wv_ref[0], preferred_element_type=jnp.float32)
         + bv).reshape(BT, S, D).astype(jnp.bfloat16)

    # Multi-head self-attention, batched over the batch-tile dim; no explicit
    # K transpose (dot_general contracts the last dims of q and k).
    ctx_heads = []
    for h in range(nhead):
        c0, c1 = h * hd, (h + 1) * hd
        qh, kh, vh = q[:, :, c0:c1], k[:, :, c0:c1], v[:, :, c0:c1]
        s = jnp.einsum('bqd,bkd->bqk', qh, kh,
                       preferred_element_type=jnp.float32)        # (BT, S, S)
        s = s - jnp.max(s, axis=-1, keepdims=True)
        p = jnp.exp(s)
        p = p * pl.reciprocal(jnp.sum(p, axis=-1, keepdims=True), approx=True)
        ctx_h = jnp.einsum('bqk,bkd->bqd', p.astype(jnp.bfloat16), vh,
                           preferred_element_type=jnp.float32)    # (BT, S, hd)
        ctx_heads.append(ctx_h.astype(jnp.bfloat16))

    # Materialized head concat (lane axis) -> ONE full-depth (K=D) output
    # projection against bf16 Wo.
    ctx = jnp.concatenate(ctx_heads, axis=-1).reshape(N, D)
    attn = jnp.dot(ctx, wo_ref[0], preferred_element_type=jnp.float32) + bo

    # Residual + LayerNorm1 (f32).
    x = _layer_norm(x + attn, ln1_g, ln1_b)

    # Feed-forward + residual + LayerNorm2.
    h1 = jnp.dot(x.astype(jnp.bfloat16), w1_ref[0],
                 preferred_element_type=jnp.float32) + b1_ref[0]
    h1 = jnp.maximum(h1, 0.0)                                     # ReLU
    ffn = jnp.dot(h1.astype(jnp.bfloat16), w2_ref[0],
                  preferred_element_type=jnp.float32) + b2
    x = _layer_norm(x + ffn, ln2_g, ln2_b)

    if has_final_norm:
        # Skip the redundant plain store on the last layer (it would be
        # immediately overwritten by the final-norm store).
        @pl.when(layer != num_layers - 1)
        def _():
            out_ref[...] = x.reshape(BT, S, D).astype(out_ref.dtype)

        @pl.when(layer == num_layers - 1)
        def _():
            y = _layer_norm(x, lnf_ref[0:1, :], lnf_ref[1:2, :])
            out_ref[...] = y.reshape(BT, S, D).astype(out_ref.dtype)
    else:
        out_ref[...] = x.reshape(BT, S, D).astype(out_ref.dtype)


# ---------------------------------------------------------------------------
# Wrapper
# ---------------------------------------------------------------------------

def _stack_encoder_params(layer_params_list, nhead):
    """Stack per-layer params along a leading L axis (kernel streams layer l)."""
    L = len(layer_params_list)
    D = layer_params_list[0]["wq"].shape[0]
    F = layer_params_list[0]["w1"].shape[1]
    scale = 1.0 / math.sqrt(D // nhead)

    def stack(name):
        return jnp.stack([p[name] for p in layer_params_list], axis=0)

    # Fused [Wq*scale || Wk] so Q/K come from one matmul; all weights bf16.
    wqk = jnp.concatenate([stack("wq") * scale, stack("wk")],
                          axis=-1).astype(jnp.bfloat16)           # (L, D, 2D)
    wv = stack("wv").astype(jnp.bfloat16)                         # (L, D, D)
    wo = stack("wo").astype(jnp.bfloat16)                         # (L, D, D)
    w1 = stack("w1").astype(jnp.bfloat16)                         # (L, D, F)
    w2 = stack("w2").astype(jnp.bfloat16)                         # (L, F, D)

    vec_rows = []
    for p in layer_params_list:
        vec_rows.append(jnp.stack(
            [p["bq"] * scale, p["bk"], p["bv"], p["bo"], p["b2"],
             p["ln1_g"], p["ln1_b"], p["ln2_g"], p["ln2_b"]], axis=0))
    vec_d = jnp.stack(vec_rows, axis=0).astype(jnp.float32)       # (L, 9, D)
    b1 = stack("b1").reshape(L, 1, F).astype(jnp.float32)         # (L, 1, F)
    return wqk, wv, wo, w1, w2, vec_d, b1


def transformer_encoder_forward(src_sbd, pos_sbd, layer_params_list, norm_params,
                                nhead, block_batch=None,
                                vmem_limit_bytes=100 * 1024 * 1024):
    """src_sbd, pos_sbd: (S, B, D) — PyTorch convention. Returns (S, B, D)."""
    S, B, D = src_sbd.shape
    L = len(layer_params_list)
    F = layer_params_list[0]["w1"].shape[1]
    assert D % nhead == 0

    # One transpose in / out around the whole fused encoder (not per layer).
    x = jnp.transpose(src_sbd, (1, 0, 2)).astype(jnp.float32)     # (B, S, D)
    p = jnp.transpose(pos_sbd, (1, 0, 2)).astype(jnp.float32)

    wqk, wv, wo, w1, w2, vec_d, b1 = _stack_encoder_params(
        layer_params_list, nhead)

    has_final_norm = norm_params is not None
    if has_final_norm:
        lnf = jnp.stack([norm_params["g"].reshape(D),
                         norm_params["b"].reshape(D)], axis=0)
    else:
        lnf = jnp.stack([jnp.ones((D,), jnp.float32),
                         jnp.zeros((D,), jnp.float32)], axis=0)
    lnf = lnf.astype(jnp.float32)                                 # (2, D)

    # Batch tiling: nb = 1 by default (single-TensorCore v5e/v6e — every
    # layer's weights stream from HBM exactly once).  On v7x pass block_batch
    # so nb is a multiple of 2 (megacore) and the tile fits 64 MiB VMEM.
    if block_batch is None:
        block_batch = B
    assert B % block_batch == 0
    bt = block_batch
    nb = B // bt

    act_spec = pl.BlockSpec((bt, S, D), lambda b, l: (b, 0, 0))

    def per_layer(shape):
        return pl.BlockSpec((1,) + shape, lambda b, l: (l, 0, 0))

    in_specs = [
        act_spec,                                   # src
        act_spec,                                   # pos
        per_layer((D, 2 * D)),                      # wqk (scaled Wq || Wk)
        per_layer((D, D)),                          # wv
        per_layer((D, D)),                          # wo (bf16)
        per_layer((D, F)),                          # w1
        per_layer((F, D)),                          # w2
        per_layer((9, D)),                          # biases + LN params (f32)
        per_layer((1, F)),                          # b1 (f32)
        pl.BlockSpec((2, D), lambda b, l: (0, 0)),  # final LayerNorm params
    ]

    kernel = functools.partial(fused_encoder_kernel, nhead=nhead,
                               num_layers=L, has_final_norm=has_final_norm)

    out = pl.pallas_call(
        kernel,
        out_shape=jax.ShapeDtypeStruct((B, S, D), jnp.float32),
        grid=(nb, L),
        in_specs=in_specs,
        out_specs=act_spec,
        compiler_params=pltpu.CompilerParams(
            dimension_semantics=("parallel", "arbitrary"),
            vmem_limit_bytes=vmem_limit_bytes),
    )(x, p, wqk, wv, wo, w1, w2, vec_d, b1, lnf)

    return jnp.transpose(out, (1, 0, 2))


# ---------------------------------------------------------------------------
# Deterministic parameter init
# ---------------------------------------------------------------------------

def init_layer_params(key, d_model, dim_feedforward):
    ks = jax.random.split(key, 6)
    s = 0.02
    # Weights stored as (in_features, out_features) — transposed relative to
    # PyTorch's (out, in) so the kernel computes x @ W.
    return {
        "wq": s * jax.random.normal(ks[0], (d_model, d_model), jnp.float32),
        "wk": s * jax.random.normal(ks[1], (d_model, d_model), jnp.float32),
        "wv": s * jax.random.normal(ks[2], (d_model, d_model), jnp.float32),
        "bq": jnp.zeros((d_model,), jnp.float32),
        "bk": jnp.zeros((d_model,), jnp.float32),
        "bv": jnp.zeros((d_model,), jnp.float32),
        "wo": s * jax.random.normal(ks[3], (d_model, d_model), jnp.float32),
        "bo": jnp.zeros((d_model,), jnp.float32),
        "ln1_g": jnp.ones((d_model,), jnp.float32),
        "ln1_b": jnp.zeros((d_model,), jnp.float32),
        "w1": s * jax.random.normal(ks[4], (d_model, dim_feedforward), jnp.float32),
        "b1": jnp.zeros((dim_feedforward,), jnp.float32),
        "w2": s * jax.random.normal(ks[5], (dim_feedforward, d_model), jnp.float32),
        "b2": jnp.zeros((d_model,), jnp.float32),
        "ln2_g": jnp.ones((d_model,), jnp.float32),
        "ln2_b": jnp.zeros((d_model,), jnp.float32),
    }


if __name__ == "__main__":
    # Small shapes: seq=8, batch=2, d_model=32, nhead=4, ffn=64, layers=2.
    S, B, D = 8, 2, 32
    NHEAD, FFN, NUM_LAYERS = 4, 64, 2

    key = jax.random.PRNGKey(0)
    k_src, k_pos, *k_layers = jax.random.split(key, 2 + NUM_LAYERS)

    # PyTorch layout: (seq, batch, d_model)
    src = jax.random.normal(k_src, (S, B, D), jnp.float32)
    pos = jax.random.normal(k_pos, (S, B, D), jnp.float32)

    layer_params = [init_layer_params(k, D, FFN) for k in k_layers]
    norm_params = {"g": jnp.ones((D,), jnp.float32),
                   "b": jnp.zeros((D,), jnp.float32)}

    out = transformer_encoder_forward(src, pos, layer_params, norm_params, NHEAD)
    out = jax.block_until_ready(out)
    assert out.shape == (S, B, D) and out.dtype == jnp.float32
    assert bool(jnp.all(jnp.isfinite(out)))
    print("KERNEL_OK")
</pallas_src>

<mosaic_0001>
module attributes {stable_mosaic.version = 11 : i64} {
  func.func @fused_encoder_kernel(%arg0: i32, %arg1: i32, %arg2: memref<2x8x32xf32, #tpu.memory_space<vmem>>, %arg3: memref<2x8x32xf32, #tpu.memory_space<vmem>>, %arg4: memref<1x32x64xbf16, #tpu.memory_space<vmem>>, %arg5: memref<1x32x32xbf16, #tpu.memory_space<vmem>>, %arg6: memref<1x32x32xbf16, #tpu.memory_space<vmem>>, %arg7: memref<1x32x64xbf16, #tpu.memory_space<vmem>>, %arg8: memref<1x64x32xbf16, #tpu.memory_space<vmem>>, %arg9: memref<1x9x32xf32, #tpu.memory_space<vmem>>, %arg10: memref<1x1x64xf32, #tpu.memory_space<vmem>>, %arg11: memref<2x32xf32, #tpu.memory_space<vmem>>, %arg12: memref<2x8x32xf32, #tpu.memory_space<vmem>>) attributes {dimension_semantics = [#tpu.dimension_semantics<parallel>, #tpu.dimension_semantics<arbitrary>], iteration_bounds = array<i64: 1, 2>, scalar_prefetch = 0 : i64, scratch_operands = 0 : i64, tpu.core_type = #tpu.core_type<tc>, window_params = [{transform_indices = @transform_0, window_bounds = array<i64: 2, 8, 32>}, {transform_indices = @transform_1, window_bounds = array<i64: 2, 8, 32>}, {transform_indices = @transform_2, window_bounds = array<i64: 1, 32, 64>}, {transform_indices = @transform_3, window_bounds = array<i64: 1, 32, 32>}, {transform_indices = @transform_4, window_bounds = array<i64: 1, 32, 32>}, {transform_indices = @transform_5, window_bounds = array<i64: 1, 32, 64>}, {transform_indices = @transform_6, window_bounds = array<i64: 1, 64, 32>}, {transform_indices = @transform_7, window_bounds = array<i64: 1, 9, 32>}, {transform_indices = @transform_8, window_bounds = array<i64: 1, 1, 64>}, {pipeline_mode = #tpu.pipeline_mode<synchronous>, transform_indices = @transform_9, window_bounds = array<i64: 2, 32>}, {transform_indices = @transform_10, window_bounds = array<i64: 2, 8, 32>}]} {
    %c0_i32 = arith.constant 0 : i32
    %0 = arith.cmpi eq, %arg1, %c0_i32 : i32
    %1 = arith.extui %0 : i1 to i32
    %c0_i32_0 = arith.constant 0 : i32
    %2 = arith.cmpi ne, %1, %c0_i32_0 : i32
    scf.if %2 {
      %c0_61 = arith.constant 0 : index
      %c0_62 = arith.constant 0 : index
      %c0_63 = arith.constant 0 : index
      %184 = vector.load %arg2[%c0_61, %c0_62, %c0_63] : memref<2x8x32xf32, #tpu.memory_space<vmem>>, vector<2x8x32xf32>
      %c0_64 = arith.constant 0 : index
      %c0_65 = arith.constant 0 : index
      %c0_66 = arith.constant 0 : index
      %185 = vector.load %arg12[%c0_64, %c0_65, %c0_66] : memref<2x8x32xf32, #tpu.memory_space<vmem>>, vector<2x8x32xf32>
      tpu.vector_store %arg12[%c0_64, %c0_65, %c0_66], %184 {strides = array<i32>} : memref<2x8x32xf32, #tpu.memory_space<vmem>>, vector<2x8x32xf32>,
    } else {
    }
    %c0 = arith.constant 0 : index
    %c0_1 = arith.constant 0 : index
    %c0_2 = arith.constant 0 : index
    %3 = vector.load %arg12[%c0, %c0_1, %c0_2] : memref<2x8x32xf32, #tpu.memory_space<vmem>>, vector<2x8x32xf32>
    %4 = vector.shape_cast %3 : vector<2x8x32xf32> to vector<16x32xf32>
    %c0_3 = arith.constant 0 : index
    %c0_4 = arith.constant 0 : index
    %c0_5 = arith.constant 0 : index
    %5 = vector.load %arg3[%c0_3, %c0_4, %c0_5] : memref<2x8x32xf32, #tpu.memory_space<vmem>>, vector<2x8x32xf32>
    %6 = vector.shape_cast %5 : vector<2x8x32xf32> to vector<16x32xf32>
    %c0_6 = arith.constant 0 : index
    %c0_7 = arith.constant 0 : index
    %c0_8 = arith.constant 0 : index
    %7 = vector.load %arg9[%c0_6, %c0_7, %c0_8] : memref<1x9x32xf32, #tpu.memory_space<vmem>>, vector<1x9x32xf32>
    %8 = vector.shape_cast %7 : vector<1x9x32xf32> to vector<9x32xf32>
    %9 = vector.extract_strided_slice %8 {offsets = [0, 0], sizes = [1, 32], strides = [1, 1]} : vector<9x32xf32> to vector<1x32xf32>
    %10 = vector.extract_strided_slice %8 {offsets = [1, 0], sizes = [1, 32], strides = [1, 1]} : vector<9x32xf32> to vector<1x32xf32>
    %11 = vector.extract_strided_slice %8 {offsets = [2, 0], sizes = [1, 32], strides = [1, 1]} : vector<9x32xf32> to vector<1x32xf32>
    %12 = vector.extract_strided_slice %8 {offsets = [3, 0], sizes = [1, 32], strides = [1, 1]} : vector<9x32xf32> to vector<1x32xf32>
    %13 = vector.extract_strided_slice %8 {offsets = [4, 0], sizes = [1, 32], strides = [1, 1]} : vector<9x32xf32> to vector<1x32xf32>
    %14 = vector.extract_strided_slice %8 {offsets = [5, 0], sizes = [1, 32], strides = [1, 1]} : vector<9x32xf32> to vector<1x32xf32>
    %15 = vector.extract_strided_slice %8 {offsets = [6, 0], sizes = [1, 32], strides = [1, 1]} : vector<9x32xf32> to vector<1x32xf32>
    %16 = vector.extract_strided_slice %8 {offsets = [7, 0], sizes = [1, 32], strides = [1, 1]} : vector<9x32xf32> to vector<1x32xf32>
    %17 = vector.extract_strided_slice %8 {offsets = [8, 0], sizes = [1, 32], strides = [1, 1]} : vector<9x32xf32> to vector<1x32xf32>
    %18 = arith.addf %4, %6 : vector<16x32xf32>
    %19 = arith.truncf %18 : vector<16x32xf32> to vector<16x32xbf16>
    %20 = arith.truncf %4 : vector<16x32xf32> to vector<16x32xbf16>
    %c0_9 = arith.constant 0 : index
    %c0_10 = arith.constant 0 : index
    %c0_11 = arith.constant 0 : index
    %21 = vector.load %arg4[%c0_9, %c0_10, %c0_11] : memref<1x32x64xbf16, #tpu.memory_space<vmem>>, vector<1x32x64xbf16>
    %22 = vector.shape_cast %21 : vector<1x32x64xbf16> to vector<32x64xbf16>
    %cst = arith.constant dense<0.000000e+00> : vector<16x64xf32>
    %23 = tpu.matmul %19, %22, %cst {dimension_numbers = #tpu.dot_dimension_numbers<[1], [0], [0], [1], [0, 0, 1, 1], [], []>} : vector<16x32xbf16>, vector<32x64xbf16>, vector<16x64xf32> -> vector<16x64xf32>
    %24 = vector.extract_strided_slice %23 {offsets = [0, 0], sizes = [16, 32], strides = [1, 1]} : vector<16x64xf32> to vector<16x32xf32>
    %25 = vector.broadcast %9 : vector<1x32xf32> to vector<16x32xf32>
    %26 = arith.addf %24, %25 : vector<16x32xf32>
    %27 = vector.shape_cast %26 : vector<16x32xf32> to vector<2x8x32xf32>
    %28 = arith.truncf %27 : vector<2x8x32xf32> to vector<2x8x32xbf16>
    %29 = vector.extract_strided_slice %23 {offsets = [0, 32], sizes = [16, 32], strides = [1, 1]} : vector<16x64xf32> to vector<16x32xf32>
    %30 = vector.broadcast %10 : vector<1x32xf32> to vector<16x32xf32>
    %31 = arith.addf %29, %30 : vector<16x32xf32>
    %32 = vector.shape_cast %31 : vector<16x32xf32> to vector<2x8x32xf32>
    %33 = arith.truncf %32 : vector<2x8x32xf32> to vector<2x8x32xbf16>
    %c0_12 = arith.constant 0 : index
    %c0_13 = arith.constant 0 : index
    %c0_14 = arith.constant 0 : index
    %34 = vector.load %arg5[%c0_12, %c0_13, %c0_14] : memref<1x32x32xbf16, #tpu.memory_space<vmem>>, vector<1x32x32xbf16>
    %35 = vector.shape_cast %34 : vector<1x32x32xbf16> to vector<32x32xbf16>
    %cst_15 = arith.constant dense<0.000000e+00> : vector<16x32xf32>
    %36 = tpu.matmul %20, %35, %cst_15 {dimension_numbers = #tpu.dot_dimension_numbers<[1], [0], [0], [1], [0, 0, 1, 1], [], []>} : vector<16x32xbf16>, vector<32x32xbf16>, vector<16x32xf32> -> vector<16x32xf32>
    %37 = vector.broadcast %11 : vector<1x32xf32> to vector<16x32xf32>
    %38 = arith.addf %36, %37 : vector<16x32xf32>
    %39 = vector.shape_cast %38 : vector<16x32xf32> to vector<2x8x32xf32>
    %40 = arith.truncf %39 : vector<2x8x32xf32> to vector<2x8x32xbf16>
    %41 = vector.extract_strided_slice %28 {offsets = [0, 0, 0], sizes = [2, 8, 8], strides = [1, 1, 1]} : vector<2x8x32xbf16> to vector<2x8x8xbf16>
    %42 = vector.extract_strided_slice %33 {offsets = [0, 0, 0], sizes = [2, 8, 8], strides = [1, 1, 1]} : vector<2x8x32xbf16> to vector<2x8x8xbf16>
    %43 = vector.extract_strided_slice %40 {offsets = [0, 0, 0], sizes = [2, 8, 8], strides = [1, 1, 1]} : vector<2x8x32xbf16> to vector<2x8x8xbf16>
    "tpu.trace_start"() <{level = 10 : i32, message = "bqd,bkd->bqk"}> : () -> ()
    %cst_16 = arith.constant dense<0.000000e+00> : vector<2x8x8xf32>
    %44 = tpu.matmul %41, %42, %cst_16 {dimension_numbers = #tpu.dot_dimension_numbers<[2], [2], [1], [1], [0, 0, 0, 1, 1, 1], [0], [0]>} : vector<2x8x8xbf16>, vector<2x8x8xbf16>, vector<2x8x8xf32> -> vector<2x8x8xf32>
    "tpu.trace_stop"() : () -> ()
    %cst_17 = arith.constant dense<0xFF800000> : vector<2x8xf32>
    %45 = vector.multi_reduction <maximumf>, %44, %cst_17 [2] : vector<2x8x8xf32> to vector<2x8xf32>
    %46 = vector.shape_cast %45 : vector<2x8xf32> to vector<2x8x1xf32>
    %47 = vector.broadcast %46 : vector<2x8x1xf32> to vector<2x8x8xf32>
    %48 = arith.subf %44, %47 : vector<2x8x8xf32>
    %49 = math.exp %48 : vector<2x8x8xf32>
    %cst_18 = arith.constant dense<0.000000e+00> : vector<2x8xf32>
    %50 = vector.multi_reduction <add>, %49, %cst_18 [2] : vector<2x8x8xf32> to vector<2x8xf32>
    %51 = vector.shape_cast %50 : vector<2x8xf32> to vector<2x8x1xf32>
    %52 = tpu.reciprocal %51 {approx = true} : vector<2x8x1xf32> -> vector<2x8x1xf32>
    %53 = vector.broadcast %52 : vector<2x8x1xf32> to vector<2x8x8xf32>
    %54 = arith.mulf %49, %53 : vector<2x8x8xf32>
    %55 = arith.truncf %54 : vector<2x8x8xf32> to vector<2x8x8xbf16>
    "tpu.trace_start"() <{level = 10 : i32, message = "bqk,bkd->bqd"}> : () -> ()
    %cst_19 = arith.constant dense<0.000000e+00> : vector<2x8x8xf32>
    %56 = tpu.matmul %55, %43, %cst_19 {dimension_numbers = #tpu.dot_dimension_numbers<[2], [1], [1], [2], [0, 0, 0, 1, 1, 2], [0], [0]>} : vector<2x8x8xbf16>, vector<2x8x8xbf16>, vector<2x8x8xf32> -> vector<2x8x8xf32>
    "tpu.trace_stop"() : () -> ()
    %57 = arith.truncf %56 : vector<2x8x8xf32> to vector<2x8x8xbf16>
    %58 = vector.extract_strided_slice %28 {offsets = [0, 0, 8], sizes = [2, 8, 8], strides = [1, 1, 1]} : vector<2x8x32xbf16> to vector<2x8x8xbf16>
    %59 = vector.extract_strided_slice %33 {offsets = [0, 0, 8], sizes = [2, 8, 8], strides = [1, 1, 1]} : vector<2x8x32xbf16> to vector<2x8x8xbf16>
    %60 = vector.extract_strided_slice %40 {offsets = [0, 0, 8], sizes = [2, 8, 8], strides = [1, 1, 1]} : vector<2x8x32xbf16> to vector<2x8x8xbf16>
    "tpu.trace_start"() <{level = 10 : i32, message = "bqd,bkd->bqk"}> : () -> ()
    %cst_20 = arith.constant dense<0.000000e+00> : vector<2x8x8xf32>
    %61 = tpu.matmul %58, %59, %cst_20 {dimension_numbers = #tpu.dot_dimension_numbers<[2], [2], [1], [1], [0, 0, 0, 1, 1, 1], [0], [0]>} : vector<2x8x8xbf16>, vector<2x8x8xbf16>, vector<2x8x8xf32> -> vector<2x8x8xf32>
    "tpu.trace_stop"() : () -> ()
    %cst_21 = arith.constant dense<0xFF800000> : vector<2x8xf32>
    %62 = vector.multi_reduction <maximumf>, %61, %cst_21 [2] : vector<2x8x8xf32> to vector<2x8xf32>
    %63 = vector.shape_cast %62 : vector<2x8xf32> to vector<2x8x1xf32>
    %64 = vector.broadcast %63 : vector<2x8x1xf32> to vector<2x8x8xf32>
    %65 = arith.subf %61, %64 : vector<2x8x8xf32>
    %66 = math.exp %65 : vector<2x8x8xf32>
    %cst_22 = arith.constant dense<0.000000e+00> : vector<2x8xf32>
    %67 = vector.multi_reduction <add>, %66, %cst_22 [2] : vector<2x8x8xf32> to vector<2x8xf32>
    %68 = vector.shape_cast %67 : vector<2x8xf32> to vector<2x8x1xf32>
    %69 = tpu.reciprocal %68 {approx = true} : vector<2x8x1xf32> -> vector<2x8x1xf32>
    %70 = vector.broadcast %69 : vector<2x8x1xf32> to vector<2x8x8xf32>
    %71 = arith.mulf %66, %70 : vector<2x8x8xf32>
    %72 = arith.truncf %71 : vector<2x8x8xf32> to vector<2x8x8xbf16>
    "tpu.trace_start"() <{level = 10 : i32, message = "bqk,bkd->bqd"}> : () -> ()
    %cst_23 = arith.constant dense<0.000000e+00> : vector<2x8x8xf32>
    %73 = tpu.matmul %72, %60, %cst_23 {dimension_numbers = #tpu.dot_dimension_numbers<[2], [1], [1], [2], [0, 0, 0, 1, 1, 2], [0], [0]>} : vector<2x8x8xbf16>, vector<2x8x8xbf16>, vector<2x8x8xf32> -> vector<2x8x8xf32>
    "tpu.trace_stop"() : () -> ()
    %74 = arith.truncf %73 : vector<2x8x8xf32> to vector<2x8x8xbf16>
    %75 = vector.extract_strided_slice %28 {offsets = [0, 0, 16], sizes = [2, 8, 8], strides = [1, 1, 1]} : vector<2x8x32xbf16> to vector<2x8x8xbf16>
    %76 = vector.extract_strided_slice %33 {offsets = [0, 0, 16], sizes = [2, 8, 8], strides = [1, 1, 1]} : vector<2x8x32xbf16> to vector<2x8x8xbf16>
    %77 = vector.extract_strided_slice %40 {offsets = [0, 0, 16], sizes = [2, 8, 8], strides = [1, 1, 1]} : vector<2x8x32xbf16> to vector<2x8x8xbf16>
    "tpu.trace_start"() <{level = 10 : i32, message = "bqd,bkd->bqk"}> : () -> ()
    %cst_24 = arith.constant dense<0.000000e+00> : vector<2x8x8xf32>
    %78 = tpu.matmul %75, %76, %cst_24 {dimension_numbers = #tpu.dot_dimension_numbers<[2], [2], [1], [1], [0, 0, 0, 1, 1, 1], [0], [0]>} : vector<2x8x8xbf16>, vector<2x8x8xbf16>, vector<2x8x8xf32> -> vector<2x8x8xf32>
    "tpu.trace_stop"() : () -> ()
    %cst_25 = arith.constant dense<0xFF800000> : vector<2x8xf32>
    %79 = vector.multi_reduction <maximumf>, %78, %cst_25 [2] : vector<2x8x8xf32> to vector<2x8xf32>
    %80 = vector.shape_cast %79 : vector<2x8xf32> to vector<2x8x1xf32>
    %81 = vector.broadcast %80 : vector<2x8x1xf32> to vector<2x8x8xf32>
    %82 = arith.subf %78, %81 : vector<2x8x8xf32>
    %83 = math.exp %82 : vector<2x8x8xf32>
    %cst_26 = arith.constant dense<0.000000e+00> : vector<2x8xf32>
    %84 = vector.multi_reduction <add>, %83, %cst_26 [2] : vector<2x8x8xf32> to vector<2x8xf32>
    %85 = vector.shape_cast %84 : vector<2x8xf32> to vector<2x8x1xf32>
    %86 = tpu.reciprocal %85 {approx = true} : vector<2x8x1xf32> -> vector<2x8x1xf32>
    %87 = vector.broadcast %86 : vector<2x8x1xf32> to vector<2x8x8xf32>
    %88 = arith.mulf %83, %87 : vector<2x8x8xf32>
    %89 = arith.truncf %88 : vector<2x8x8xf32> to vector<2x8x8xbf16>
    "tpu.trace_start"() <{level = 10 : i32, message = "bqk,bkd->bqd"}> : () -> ()
    %cst_27 = arith.constant dense<0.000000e+00> : vector<2x8x8xf32>
    %90 = tpu.matmul %89, %77, %cst_27 {dimension_numbers = #tpu.dot_dimension_numbers<[2], [1], [1], [2], [0, 0, 0, 1, 1, 2], [0], [0]>} : vector<2x8x8xbf16>, vector<2x8x8xbf16>, vector<2x8x8xf32> -> vector<2x8x8xf32>
    "tpu.trace_stop"() : () -> ()
    %91 = arith.truncf %90 : vector<2x8x8xf32> to vector<2x8x8xbf16>
    %92 = vector.extract_strided_slice %28 {offsets = [0, 0, 24], sizes = [2, 8, 8], strides = [1, 1, 1]} : vector<2x8x32xbf16> to vector<2x8x8xbf16>
    %93 = vector.extract_strided_slice %33 {offsets = [0, 0, 24], sizes = [2, 8, 8], strides = [1, 1, 1]} : vector<2x8x32xbf16> to vector<2x8x8xbf16>
    %94 = vector.extract_strided_slice %40 {offsets = [0, 0, 24], sizes = [2, 8, 8], strides = [1, 1, 1]} : vector<2x8x32xbf16> to vector<2x8x8xbf16>
    "tpu.trace_start"() <{level = 10 : i32, message = "bqd,bkd->bqk"}> : () -> ()
    %cst_28 = arith.constant dense<0.000000e+00> : vector<2x8x8xf32>
    %95 = tpu.matmul %92, %93, %cst_28 {dimension_numbers = #tpu.dot_dimension_numbers<[2], [2], [1], [1], [0, 0, 0, 1, 1, 1], [0], [0]>} : vector<2x8x8xbf16>, vector<2x8x8xbf16>, vector<2x8x8xf32> -> vector<2x8x8xf32>
    "tpu.trace_stop"() : () -> ()
    %cst_29 = arith.constant dense<0xFF800000> : vector<2x8xf32>
    %96 = vector.multi_reduction <maximumf>, %95, %cst_29 [2] : vector<2x8x8xf32> to vector<2x8xf32>
    %97 = vector.shape_cast %96 : vector<2x8xf32> to vector<2x8x1xf32>
    %98 = vector.broadcast %97 : vector<2x8x1xf32> to vector<2x8x8xf32>
    %99 = arith.subf %95, %98 : vector<2x8x8xf32>
    %100 = math.exp %99 : vector<2x8x8xf32>
    %cst_30 = arith.constant dense<0.000000e+00> : vector<2x8xf32>
    %101 = vector.multi_reduction <add>, %100, %cst_30 [2] : vector<2x8x8xf32> to vector<2x8xf32>
    %102 = vector.shape_cast %101 : vector<2x8xf32> to vector<2x8x1xf32>
    %103 = tpu.reciprocal %102 {approx = true} : vector<2x8x1xf32> -> vector<2x8x1xf32>
    %104 = vector.broadcast %103 : vector<2x8x1xf32> to vector<2x8x8xf32>
    %105 = arith.mulf %100, %104 : vector<2x8x8xf32>
    %106 = arith.truncf %105 : vector<2x8x8xf32> to vector<2x8x8xbf16>
    "tpu.trace_start"() <{level = 10 : i32, message = "bqk,bkd->bqd"}> : () -> ()
    %cst_31 = arith.constant dense<0.000000e+00> : vector<2x8x8xf32>
    %107 = tpu.matmul %106, %94, %cst_31 {dimension_numbers = #tpu.dot_dimension_numbers<[2], [1], [1], [2], [0, 0, 0, 1, 1, 2], [0], [0]>} : vector<2x8x8xbf16>, vector<2x8x8xbf16>, vector<2x8x8xf32> -> vector<2x8x8xf32>
    "tpu.trace_stop"() : () -> ()
    %108 = arith.truncf %107 : vector<2x8x8xf32> to vector<2x8x8xbf16>
    %109 = tpu.concatenate %57, %74, %91, %108 in 2 : vector<2x8x8xbf16>, vector<2x8x8xbf16>, vector<2x8x8xbf16>, vector<2x8x8xbf16> -> vector<2x8x32xbf16>
    %110 = vector.shape_cast %109 : vector<2x8x32xbf16> to vector<16x32xbf16>
    %c0_32 = arith.constant 0 : index
    %c0_33 = arith.constant 0 : index
    %c0_34 = arith.constant 0 : index
    %111 = vector.load %arg6[%c0_32, %c0_33, %c0_34] : memref<1x32x32xbf16, #tpu.memory_space<vmem>>, vector<1x32x32xbf16>
    %112 = vector.shape_cast %111 : vector<1x32x32xbf16> to vector<32x32xbf16>
    %cst_35 = arith.constant dense<0.000000e+00> : vector<16x32xf32>
    %113 = tpu.matmul %110, %112, %cst_35 {dimension_numbers = #tpu.dot_dimension_numbers<[1], [0], [0], [1], [0, 0, 1, 1], [], []>} : vector<16x32xbf16>, vector<32x32xbf16>, vector<16x32xf32> -> vector<16x32xf32>
    %114 = vector.broadcast %12 : vector<1x32xf32> to vector<16x32xf32>
    %115 = arith.addf %113, %114 : vector<16x32xf32>
    %116 = arith.addf %4, %115 : vector<16x32xf32>
    %cst_36 = arith.constant dense<0.000000e+00> : vector<16xf32>
    %117 = vector.multi_reduction <add>, %116, %cst_36 [1] : vector<16x32xf32> to vector<16xf32>
    %118 = vector.shape_cast %117 : vector<16xf32> to vector<16x1xf32>
    %cst_37 = arith.constant 3.200000e+01 : f32
    %119 = vector.broadcast %cst_37 : f32 to vector<16x1xf32>
    %120 = arith.divf %118, %119 : vector<16x1xf32>
    %121 = vector.broadcast %120 : vector<16x1xf32> to vector<16x32xf32>
    %122 = arith.subf %116, %121 : vector<16x32xf32>
    %123 = arith.mulf %122, %122 : vector<16x32xf32>
    %cst_38 = arith.constant dense<0.000000e+00> : vector<16xf32>
    %124 = vector.multi_reduction <add>, %123, %cst_38 [1] : vector<16x32xf32> to vector<16xf32>
    %125 = vector.shape_cast %124 : vector<16xf32> to vector<16x1xf32>
    %cst_39 = arith.constant 3.200000e+01 : f32
    %126 = vector.broadcast %cst_39 : f32 to vector<16x1xf32>
    %127 = arith.divf %125, %126 : vector<16x1xf32>
    %128 = vector.broadcast %120 : vector<16x1xf32> to vector<16x32xf32>
    %129 = arith.subf %116, %128 : vector<16x32xf32>
    %cst_40 = arith.constant 9.99999974E-6 : f32
    %130 = vector.broadcast %cst_40 : f32 to vector<16x1xf32>
    %131 = arith.addf %127, %130 : vector<16x1xf32>
    %132 = math.rsqrt %131 : vector<16x1xf32>
    %133 = vector.broadcast %132 : vector<16x1xf32> to vector<16x32xf32>
    %134 = arith.mulf %129, %133 : vector<16x32xf32>
    %135 = vector.broadcast %14 : vector<1x32xf32> to vector<16x32xf32>
    %136 = arith.mulf %134, %135 : vector<16x32xf32>
    %137 = vector.broadcast %15 : vector<1x32xf32> to vector<16x32xf32>
    %138 = arith.addf %136, %137 : vector<16x32xf32>
    %139 = arith.truncf %138 : vector<16x32xf32> to vector<16x32xbf16>
    %c0_41 = arith.constant 0 : index
    %c0_42 = arith.constant 0 : index
    %c0_43 = arith.constant 0 : index
    %140 = vector.load %arg7[%c0_41, %c0_42, %c0_43] : memref<1x32x64xbf16, #tpu.memory_space<vmem>>, vector<1x32x64xbf16>
    %141 = vector.shape_cast %140 : vector<1x32x64xbf16> to vector<32x64xbf16>
    %cst_44 = arith.constant dense<0.000000e+00> : vector<16x64xf32>
    %142 = tpu.matmul %139, %141, %cst_44 {dimension_numbers = #tpu.dot_dimension_numbers<[1], [0], [0], [1], [0, 0, 1, 1], [], []>} : vector<16x32xbf16>, vector<32x64xbf16>, vector<16x64xf32> -> vector<16x64xf32>
    %c0_45 = arith.constant 0 : index
    %c0_46 = arith.constant 0 : index
    %c0_47 = arith.constant 0 : index
    %143 = vector.load %arg10[%c0_45, %c0_46, %c0_47] : memref<1x1x64xf32, #tpu.memory_space<vmem>>, vector<1x1x64xf32>
    %144 = vector.shape_cast %143 : vector<1x1x64xf32> to vector<1x64xf32>
    %145 = vector.broadcast %144 : vector<1x64xf32> to vector<16x64xf32>
    %146 = arith.addf %142, %145 : vector<16x64xf32>
    %cst_48 = arith.constant 0.000000e+00 : f32
    %147 = vector.broadcast %cst_48 : f32 to vector<16x64xf32>
    %148 = arith.maximumf %146, %147 : vector<16x64xf32>
    %149 = arith.truncf %148 : vector<16x64xf32> to vector<16x64xbf16>
    %c0_49 = arith.constant 0 : index
    %c0_50 = arith.constant 0 : index
    %c0_51 = arith.constant 0 : index
    %150 = vector.load %arg8[%c0_49, %c0_50, %c0_51] : memref<1x64x32xbf16, #tpu.memory_space<vmem>>, vector<1x64x32xbf16>
    %151 = vector.shape_cast %150 : vector<1x64x32xbf16> to vector<64x32xbf16>
    %cst_52 = arith.constant dense<0.000000e+00> : vector<16x32xf32>
    %152 = tpu.matmul %149, %151, %cst_52 {dimension_numbers = #tpu.dot_dimension_numbers<[1], [0], [0], [1], [0, 0, 1, 1], [], []>} : vector<16x64xbf16>, vector<64x32xbf16>, vector<16x32xf32> -> vector<16x32xf32>
    %153 = vector.broadcast %13 : vector<1x32xf32> to vector<16x32xf32>
    %154 = arith.addf %152, %153 : vector<16x32xf32>
    %155 = arith.addf %138, %154 : vector<16x32xf32>
    %cst_53 = arith.constant dense<0.000000e+00> : vector<16xf32>
    %156 = vector.multi_reduction <add>, %155, %cst_53 [1] : vector<16x32xf32> to vector<16xf32>
    %157 = vector.shape_cast %156 : vector<16xf32> to vector<16x1xf32>
    %cst_54 = arith.constant 3.200000e+01 : f32
    %158 = vector.broadcast %cst_54 : f32 to vector<16x1xf32>
    %159 = arith.divf %157, %158 : vector<16x1xf32>
    %160 = vector.broadcast %159 : vector<16x1xf32> to vector<16x32xf32>
    %161 = arith.subf %155, %160 : vector<16x32xf32>
    %162 = arith.mulf %161, %161 : vector<16x32xf32>
    %cst_55 = arith.constant dense<0.000000e+00> : vector<16xf32>
    %163 = vector.multi_reduction <add>, %162, %cst_55 [1] : vector<16x32xf32> to vector<16xf32>
    %164 = vector.shape_cast %163 : vector<16xf32> to vector<16x1xf32>
    %cst_56 = arith.constant 3.200000e+01 : f32
    %165 = vector.broadcast %cst_56 : f32 to vector<16x1xf32>
    %166 = arith.divf %164, %165 : vector<16x1xf32>
    %167 = vector.broadcast %159 : vector<16x1xf32> to vector<16x32xf32>
    %168 = arith.subf %155, %167 : vector<16x32xf32>
    %cst_57 = arith.constant 9.99999974E-6 : f32
    %169 = vector.broadcast %cst_57 : f32 to vector<16x1xf32>
    %170 = arith.addf %166, %169 : vector<16x1xf32>
    %171 = math.rsqrt %170 : vector<16x1xf32>
    %172 = vector.broadcast %171 : vector<16x1xf32> to vector<16x32xf32>
    %173 = arith.mulf %168, %172 : vector<16x32xf32>
    %174 = vector.broadcast %16 : vector<1x32xf32> to vector<16x32xf32>
    %175 = arith.mulf %173, %174 : vector<16x32xf32>
    %176 = vector.broadcast %17 : vector<1x32xf32> to vector<16x32xf32>
    %177 = arith.addf %175, %176 : vector<16x32xf32>
    %c1_i32 = arith.constant 1 : i32
    %178 = arith.cmpi ne, %arg1, %c1_i32 : i32
    %179 = arith.extui %178 : i1 to i32
    %c0_i32_58 = arith.constant 0 : i32
    %180 = arith.cmpi ne, %179, %c0_i32_58 : i32
    scf.if %180 {
      %184 = vector.shape_cast %177 : vector<16x32xf32> to vector<2x8x32xf32>
      %c0_61 = arith.constant 0 : index
      %c0_62 = arith.constant 0 : index
      %c0_63 = arith.constant 0 : index
      %185 = vector.load %arg12[%c0_61, %c0_62, %c0_63] : memref<2x8x32xf32, #tpu.memory_space<vmem>>, vector<2x8x32xf32>
      tpu.vector_store %arg12[%c0_61, %c0_62, %c0_63], %184 {strides = array<i32>} : memref<2x8x32xf32, #tpu.memory_space<vmem>>, vector<2x8x32xf32>,
    } else {
    }
    %c1_i32_59 = arith.constant 1 : i32
    %181 = arith.cmpi eq, %arg1, %c1_i32_59 : i32
    %182 = arith.extui %181 : i1 to i32
    %c0_i32_60 = arith.constant 0 : i32
    %183 = arith.cmpi ne, %182, %c0_i32_60 : i32
    scf.if %183 {
      %c0_61 = arith.constant 0 : index
      %c0_62 = arith.constant 0 : index
      %184 = vector.load %arg11[%c0_61, %c0_62] : memref<2x32xf32, #tpu.memory_space<vmem>>, vector<1x32xf32>
      %c1 = arith.constant 1 : index
      %c0_63 = arith.constant 0 : index
      %185 = vector.load %arg11[%c1, %c0_63] : memref<2x32xf32, #tpu.memory_space<vmem>>, vector<1x32xf32>
      %cst_64 = arith.constant dense<0.000000e+00> : vector<16xf32>
      %186 = vector.multi_reduction <add>, %177, %cst_64 [1] : vector<16x32xf32> to vector<16xf32>
      %187 = vector.shape_cast %186 : vector<16xf32> to vector<16x1xf32>
      %cst_65 = arith.constant 3.200000e+01 : f32
      %188 = vector.broadcast %cst_65 : f32 to vector<16x1xf32>
      %189 = arith.divf %187, %188 : vector<16x1xf32>
      %190 = vector.broadcast %189 : vector<16x1xf32> to vector<16x32xf32>
      %191 = arith.subf %177, %190 : vector<16x32xf32>
      %192 = arith.mulf %191, %191 : vector<16x32xf32>
      %cst_66 = arith.constant dense<0.000000e+00> : vector<16xf32>
      %193 = vector.multi_reduction <add>, %192, %cst_66 [1] : vector<16x32xf32> to vector<16xf32>
      %194 = vector.shape_cast %193 : vector<16xf32> to vector<16x1xf32>
      %cst_67 = arith.constant 3.200000e+01 : f32
      %195 = vector.broadcast %cst_67 : f32 to vector<16x1xf32>
      %196 = arith.divf %194, %195 : vector<16x1xf32>
      %197 = vector.broadcast %189 : vector<16x1xf32> to vector<16x32xf32>
      %198 = arith.subf %177, %197 : vector<16x32xf32>
      %cst_68 = arith.constant 9.99999974E-6 : f32
      %199 = vector.broadcast %cst_68 : f32 to vector<16x1xf32>
      %200 = arith.addf %196, %199 : vector<16x1xf32>
      %201 = math.rsqrt %200 : vector<16x1xf32>
      %202 = vector.broadcast %201 : vector<16x1xf32> to vector<16x32xf32>
      %203 = arith.mulf %198, %202 : vector<16x32xf32>
      %204 = vector.broadcast %184 : vector<1x32xf32> to vector<16x32xf32>
      %205 = arith.mulf %203, %204 : vector<16x32xf32>
      %206 = vector.broadcast %185 : vector<1x32xf32> to vector<16x32xf32>
      %207 = arith.addf %205, %206 : vector<16x32xf32>
      %208 = vector.shape_cast %207 : vector<16x32xf32> to vector<2x8x32xf32>
      %c0_69 = arith.constant 0 : index
      %c0_70 = arith.constant 0 : index
      %c0_71 = arith.constant 0 : index
      %209 = vector.load %arg12[%c0_69, %c0_70, %c0_71] : memref<2x8x32xf32, #tpu.memory_space<vmem>>, vector<2x8x32xf32>
      tpu.vector_store %arg12[%c0_69, %c0_70, %c0_71], %208 {strides = array<i32>} : memref<2x8x32xf32, #tpu.memory_space<vmem>>, vector<2x8x32xf32>,
    } else {
    }
    return
  }
  func.func @transform_0(%arg0: i32, %arg1: i32) -> (i32, i32, i32) {
    %c0_i32 = arith.constant 0 : i32
    %c0_i32_0 = arith.constant 0 : i32
    %c0_i32_1 = arith.constant 0 : i32
    return %arg0, %c0_i32, %c0_i32_0 : i32, i32, i32
  }
  func.func @transform_1(%arg0: i32, %arg1: i32) -> (i32, i32, i32) {
    %c0_i32 = arith.constant 0 : i32
    %c0_i32_0 = arith.constant 0 : i32
    %c0_i32_1 = arith.constant 0 : i32
    return %arg0, %c0_i32, %c0_i32_0 : i32, i32, i32
  }
  func.func @transform_2(%arg0: i32, %arg1: i32) -> (i32, i32, i32) {
    %c0_i32 = arith.constant 0 : i32
    %c0_i32_0 = arith.constant 0 : i32
    %c0_i32_1 = arith.constant 0 : i32
    return %arg1, %c0_i32, %c0_i32_0 : i32, i32, i32
  }
  func.func @transform_3(%arg0: i32, %arg1: i32) -> (i32, i32, i32) {
    %c0_i32 = arith.constant 0 : i32
    %c0_i32_0 = arith.constant 0 : i32
    %c0_i32_1 = arith.constant 0 : i32
    return %arg1, %c0_i32, %c0_i32_0 : i32, i32, i32
  }
  func.func @transform_4(%arg0: i32, %arg1: i32) -> (i32, i32, i32) {
    %c0_i32 = arith.constant 0 : i32
    %c0_i32_0 = arith.constant 0 : i32
    %c0_i32_1 = arith.constant 0 : i32
    return %arg1, %c0_i32, %c0_i32_0 : i32, i32, i32
  }
  func.func @transform_5(%arg0: i32, %arg1: i32) -> (i32, i32, i32) {
    %c0_i32 = arith.constant 0 : i32
    %c0_i32_0 = arith.constant 0 : i32
    %c0_i32_1 = arith.constant 0 : i32
    return %arg1, %c0_i32, %c0_i32_0 : i32, i32, i32
  }
  func.func @transform_6(%arg0: i32, %arg1: i32) -> (i32, i32, i32) {
    %c0_i32 = arith.constant 0 : i32
    %c0_i32_0 = arith.constant 0 : i32
    %c0_i32_1 = arith.constant 0 : i32
    return %arg1, %c0_i32, %c0_i32_0 : i32, i32, i32
  }
  func.func @transform_7(%arg0: i32, %arg1: i32) -> (i32, i32, i32) {
    %c0_i32 = arith.constant 0 : i32
    %c0_i32_0 = arith.constant 0 : i32
    %c0_i32_1 = arith.constant 0 : i32
    return %arg1, %c0_i32, %c0_i32_0 : i32, i32, i32
  }
  func.func @transform_8(%arg0: i32, %arg1: i32) -> (i32, i32, i32) {
    %c0_i32 = arith.constant 0 : i32
    %c0_i32_0 = arith.constant 0 : i32
    %c0_i32_1 = arith.constant 0 : i32
    return %arg1, %c0_i32, %c0_i32_0 : i32, i32, i32
  }
  func.func @transform_9(%arg0: i32, %arg1: i32) -> (i32, i32) {
    %c0_i32 = arith.constant 0 : i32
    %c0_i32_0 = arith.constant 0 : i32
    %c0_i32_1 = arith.constant 0 : i32
    return %c0_i32, %c0_i32_0 : i32, i32
  }
  func.func @transform_10(%arg0: i32, %arg1: i32) -> (i32, i32, i32) {
    %c0_i32 = arith.constant 0 : i32
    %c0_i32_0 = arith.constant 0 : i32
    %c0_i32_1 = arith.constant 0 : i32
    return %arg0, %c0_i32, %c0_i32_0 : i32, i32, i32
  }
}

</mosaic_0001>

<llo_original>
// kernel: tpu_custom_call.1
$region0: #{tpu_custom_call.1}
  #allocation0 [shape = 'u32[]', space=smem, size = 0x4, offset = 0x4, fixed_abs, tag = 'smem constant byte address 0x4 - core index']
  #allocation1 [shape = 'u32[144,128]{1,0:T(1,128)}', space=vmem, size = 0x12000, scoped, tag = 'internal scratch']
  %s0 = inlined_call_operand.hbm [shape: f32[2,8,32], index: 0, kind: input, shape index: {}]
  %s1 = inlined_call_operand.hbm [shape: f32[2,8,32], index: 1, kind: input, shape index: {}]
  %s2 = inlined_call_operand.hbm [shape: bf16[2,32,64], index: 2, kind: input, shape index: {}]
  %s3 = inlined_call_operand.hbm [shape: bf16[2,32,32], index: 3, kind: input, shape index: {}]
  %s4 = inlined_call_operand.hbm [shape: bf16[2,32,32], index: 4, kind: input, shape index: {}]
  %s5 = inlined_call_operand.hbm [shape: bf16[2,32,64], index: 5, kind: input, shape index: {}]
  %s6 = inlined_call_operand.hbm [shape: bf16[2,64,32], index: 6, kind: input, shape index: {}]
  %s7 = inlined_call_operand.hbm [shape: f32[2,9,32], index: 7, kind: input, shape index: {}]
  %s8 = inlined_call_operand.hbm [shape: f32[2,1,64], index: 8, kind: input, shape index: {}]
  %s9 = inlined_call_operand.hbm [shape: f32[2,32], index: 9, kind: input, shape index: {}]
  %s10 = inlined_call_operand.hbm [shape: f32[2,8,32], index: 10, kind: output, shape index: {}]
  %s11 = sld [smem:[#allocation0]]
  $region125: #{tpu_custom_call.1} parent=0
    _
  %s13 = ssub.s32 1, %s11
  %s14 = scalar_select 0, %s13, %s11
  $region1: #{tpu_custom_call.1} parent=0
    #allocation2 [shape = 'u8[8192]{0}', space=vmem, size = 0x2000, scoped, tag = 'input window, operand 0, single buffered']
    #allocation3 [shape = 's32[2]{0}', space=sflag, size = 0x8, scoped, tag = 'scoped memory for tpu_custom_call.1']
    #allocation4 [shape = 's32[2]{0}', space=sflag, size = 0x8, scoped, tag = 'scoped memory for tpu_custom_call.1']
    #allocation5 [shape = 'u8[8192]{0}', space=vmem, size = 0x2000, scoped, tag = 'input window, operand 1, single buffered']
    #allocation6 [shape = 's32[1]{0}', space=sflag, size = 0x4, scoped, tag = 'scoped memory for tpu_custom_call.1']
    #allocation7 [shape = 'u8[16384]{0}', space=vmem, size = 0x4000, scoped, tag = 'input window, operand 2']
    #allocation8 [shape = 'u8[16384]{0}', space=vmem, size = 0x4000, scoped, tag = 'input window, operand 3']
    #allocation9 [shape = 'u8[16384]{0}', space=vmem, size = 0x4000, scoped, tag = 'input window, operand 4']
    #allocation10 [shape = 'u8[16384]{0}', space=vmem, size = 0x4000, scoped, tag = 'input window, operand 5']
    #allocation11 [shape = 'u8[32768]{0}', space=vmem, size = 0x8000, scoped, tag = 'input window, operand 6']
    #allocation12 [shape = 'u8[16384]{0}', space=vmem, size = 0x4000, scoped, tag = 'input window, operand 7']
    #allocation13 [shape = 'u8[1024]{0}', space=vmem, size = 0x400, scoped, tag = 'input window, operand 8']
    #allocation14 [shape = 'u8[1024]{0}', space=vmem, size = 0x400, scoped, tag = 'input window, operand 9, single buffered']
    #allocation15 [shape = 'u8[8192]{0}', space=vmem, size = 0x2000, scoped, tag = 'output window, operand 0, single buffered']
    %15 = vsyncpa [#allocation3], 0
    %16 = vsyncpa [#allocation6], 0
    %17 = vsyncpa [#allocation4], 0
    loop: start=0, step=1, limit=4
    $region2: #{tpu_custom_call.1} parent=1 // loop_pre_header
      _
    $region3: #{tpu_custom_call.1} parent=1 // loop_header
      %s19 = sphi 0, %s23
      %p20 = scmp.ge.s32.totalorder %s19, 4
      %s26 = sphi 0, %s38
      %s27 = sphi 0, %s34
      %s28 = sphi 0, %s26
      %s29 = sphi 0, %s27
      %s30 = sphi 0, %s28
      %s31 = sphi 0, %s29
      %s41 = sphi 0, %s43
      %s44 = sphi 0, %s41
      %s45 = sphi 0, %s44
      %s61 = sphi 0, %s45
      %s67 = sphi 0, %s69
      %s70 = sphi 0, %s67
      %s71 = sphi 0, %s70
      %s87 = sphi 0, %s71
      %s93 = sphi 0, %s95
      %s96 = sphi 0, %s93
      %s97 = sphi 0, %s96
      %s113 = sphi 0, %s97
      %s119 = sphi 0, %s121
      %s122 = sphi 0, %s119
      %s123 = sphi 0, %s122
      %s139 = sphi 0, %s123
      %s145 = sphi 0, %s147
      %s148 = sphi 0, %s145
      %s149 = sphi 0, %s148
      %s165 = sphi 0, %s149
      %s171 = sphi 0, %s173
      %s174 = sphi 0, %s171
      %s175 = sphi 0, %s174
      %s191 = sphi 0, %s175
      %s197 = sphi 0, %s199
      %s200 = sphi 0, %s197
      %s201 = sphi 0, %s200
      %s217 = sphi 0, %s201
      %s223 = sphi 0, %s225
      %s226 = sphi 0, %s223
      %s227 = sphi 0, %s226
      %s243 = sphi 0, %s227
      %s249 = sphi 0, %s251
      %s252 = sphi 0, %s249
      %s253 = sphi 0, %s252
      %s269 = sphi 0, %s253
      %s273 = sphi 0, %s273
      %s275 = sphi 0, %s273
      %s276 = sphi 0, %s275
      %s290 = sphi 0, %s276
      %s296 = sphi 0, %s298
      %s299 = sphi 0, %s296
      %s300 = sphi 0, %s299
      %s316 = sphi 0, %s300
    $region4: #{tpu_custom_call.1} parent=1 // loop_header_branch
      %22 = sbr.rel (%p20) target = $region8
    $region5: #{tpu_custom_call.1} parent=1 // loop_body
      %s24 = ssub.s32 %s19, 1
      %s25 = ssub.s32 %s19, 2
      %s32 = sadd.s32 1, %s27
      %p33 = scmp.ge.s32.totalorder %s32, 2
      %s34 = scalar_select %p33, 0, %s32
      %s35 = sadd.s32 1, %s26
      %s36 = scalar_select %p33, %s35, %s26
      %p37 = scmp.ge.s32.totalorder %s36, 1
      %s38 = scalar_select %p37, 0, %s36
      %s39 = ssub.s32 %s26, %s38
      %p40 = scmp.eq.s32.totalorder %s39, 0
      %s42 = sadd.s32 %s41, 1
      %s43 = scalar_select %p40, %s41, %s42
      %p46 = pneg %p40
      %p47 = scmp.eq.s32.totalorder %s19, 1
      %p48 = por %p46, %p47
      %p49 = scmp.ne.s32.totalorder %s41, %s44
      %p50 = scmp.eq.s32.totalorder %s19, 0
      %p51 = por %p49, %p50
      %p52 = scmp.ne.s32.totalorder %s41, %s44
      %p53 = scmp.eq.s32.totalorder %s24, 1
      %p54 = por %p52, %p53
      %p55 = scmp.ne.s32.totalorder %s44, %s45
      %p56 = scmp.eq.s32.totalorder %s24, 0
      %p57 = por %p55, %p56
      %p58 = scmp.ne.s32.totalorder %s44, %s45
      %p59 = scmp.eq.s32.totalorder %s25, 1
      %p60 = por %p58, %p59
      %p62 = scmp.ne.s32.totalorder %s45, %s61
      %p63 = scmp.eq.s32.totalorder %s25, 0
      %p64 = por %p62, %p63
      %s65 = ssub.s32 %s26, %s38
      %p66 = scmp.eq.s32.totalorder %s65, 0
      %s68 = sadd.s32 %s67, 1
      %s69 = scalar_select %p66, %s67, %s68
      %p72 = pneg %p66
      %p73 = scmp.eq.s32.totalorder %s19, 1
      %p74 = por %p72, %p73
      %p75 = scmp.ne.s32.totalorder %s67, %s70
      %p76 = scmp.eq.s32.totalorder %s19, 0
      %p77 = por %p75, %p76
      %p78 = scmp.ne.s32.totalorder %s67, %s70
      %p79 = scmp.eq.s32.totalorder %s24, 1
      %p80 = por %p78, %p79
      %p81 = scmp.ne.s32.totalorder %s70, %s71
      %p82 = scmp.eq.s32.totalorder %s24, 0
      %p83 = por %p81, %p82
      %p84 = scmp.ne.s32.totalorder %s70, %s71
      %p85 = scmp.eq.s32.totalorder %s25, 1
      %p86 = por %p84, %p85
      %p88 = scmp.ne.s32.totalorder %s71, %s87
      %p89 = scmp.eq.s32.totalorder %s25, 0
      %p90 = por %p88, %p89
      %s91 = ssub.s32 %s27, %s34
      %p92 = scmp.eq.s32.totalorder %s91, 0
      %s94 = sadd.s32 %s93, 1
      %s95 = scalar_select %p92, %s93, %s94
      %p98 = pneg %p92
      %p99 = scmp.eq.s32.totalorder %s19, 1
      %p100 = por %p98, %p99
      %p101 = scmp.ne.s32.totalorder %s93, %s96
      %p102 = scmp.eq.s32.totalorder %s19, 0
      %p103 = por %p101, %p102
      %p104 = scmp.ne.s32.totalorder %s93, %s96
      %p105 = scmp.eq.s32.totalorder %s24, 1
      %p106 = por %p104, %p105
      %p107 = scmp.ne.s32.totalorder %s96, %s97
      %p108 = scmp.eq.s32.totalorder %s24, 0
      %p109 = por %p107, %p108
      %p110 = scmp.ne.s32.totalorder %s96, %s97
      %p111 = scmp.eq.s32.totalorder %s25, 1
      %p112 = por %p110, %p111
      %p114 = scmp.ne.s32.totalorder %s97, %s113
      %p115 = scmp.eq.s32.totalorder %s25, 0
      %p116 = por %p114, %p115
      %s117 = ssub.s32 %s27, %s34
      %p118 = scmp.eq.s32.totalorder %s117, 0
      %s120 = sadd.s32 %s119, 1
      %s121 = scalar_select %p118, %s119, %s120
      %p124 = pneg %p118
      %p125 = scmp.eq.s32.totalorder %s19, 1
      %p126 = por %p124, %p125
      %p127 = scmp.ne.s32.totalorder %s119, %s122
      %p128 = scmp.eq.s32.totalorder %s19, 0
      %p129 = por %p127, %p128
      %p130 = scmp.ne.s32.totalorder %s119, %s122
      %p131 = scmp.eq.s32.totalorder %s24, 1
      %p132 = por %p130, %p131
      %p133 = scmp.ne.s32.totalorder %s122, %s123
      %p134 = scmp.eq.s32.totalorder %s24, 0
      %p135 = por %p133, %p134
      %p136 = scmp.ne.s32.totalorder %s122, %s123
      %p137 = scmp.eq.s32.totalorder %s25, 1
      %p138 = por %p136, %p137
      %p140 = scmp.ne.s32.totalorder %s123, %s139
      %p141 = scmp.eq.s32.totalorder %s25, 0
      %p142 = por %p140, %p141
      %s143 = ssub.s32 %s27, %s34
      %p144 = scmp.eq.s32.totalorder %s143, 0
      %s146 = sadd.s32 %s145, 1
      %s147 = scalar_select %p144, %s145, %s146
      %p150 = pneg %p144
      %p151 = scmp.eq.s32.totalorder %s19, 1
      %p152 = por %p150, %p151
      %p153 = scmp.ne.s32.totalorder %s145, %s148
      %p154 = scmp.eq.s32.totalorder %s19, 0
      %p155 = por %p153, %p154
      %p156 = scmp.ne.s32.totalorder %s145, %s148
      %p157 = scmp.eq.s32.totalorder %s24, 1
      %p158 = por %p156, %p157
      %p159 = scmp.ne.s32.totalorder %s148, %s149
      %p160 = scmp.eq.s32.totalorder %s24, 0
      %p161 = por %p159, %p160
      %p162 = scmp.ne.s32.totalorder %s148, %s149
      %p163 = scmp.eq.s32.totalorder %s25, 1
      %p164 = por %p162, %p163
      %p166 = scmp.ne.s32.totalorder %s149, %s165
      %p167 = scmp.eq.s32.totalorder %s25, 0
      %p168 = por %p166, %p167
      %s169 = ssub.s32 %s27, %s34
      %p170 = scmp.eq.s32.totalorder %s169, 0
      %s172 = sadd.s32 %s171, 1
      %s173 = scalar_select %p170, %s171, %s172
      %p176 = pneg %p170
      %p177 = scmp.eq.s32.totalorder %s19, 1
      %p178 = por %p176, %p177
      %p179 = scmp.ne.s32.totalorder %s171, %s174
      %p180 = scmp.eq.s32.totalorder %s19, 0
      %p181 = por %p179, %p180
      %p182 = scmp.ne.s32.totalorder %s171, %s174
      %p183 = scmp.eq.s32.totalorder %s24, 1
      %p184 = por %p182, %p183
      %p185 = scmp.ne.s32.totalorder %s174, %s175
      %p186 = scmp.eq.s32.totalorder %s24, 0
      %p187 = por %p185, %p186
      %p188 = scmp.ne.s32.totalorder %s174, %s175
      %p189 = scmp.eq.s32.totalorder %s25, 1
      %p190 = por %p188, %p189
      %p192 = scmp.ne.s32.totalorder %s175, %s191
      %p193 = scmp.eq.s32.totalorder %s25, 0
      %p194 = por %p192, %p193
      %s195 = ssub.s32 %s27, %s34
      %p196 = scmp.eq.s32.totalorder %s195, 0
      %s198 = sadd.s32 %s197, 1
      %s199 = scalar_select %p196, %s197, %s198
      %p202 = pneg %p196
      %p203 = scmp.eq.s32.totalorder %s19, 1
      %p204 = por %p202, %p203
      %p205 = scmp.ne.s32.totalorder %s197, %s200
      %p206 = scmp.eq.s32.totalorder %s19, 0
      %p207 = por %p205, %p206
      %p208 = scmp.ne.s32.totalorder %s197, %s200
      %p209 = scmp.eq.s32.totalorder %s24, 1
      %p210 = por %p208, %p209
      %p211 = scmp.ne.s32.totalorder %s200, %s201
      %p212 = scmp.eq.s32.totalorder %s24, 0
      %p213 = por %p211, %p212
      %p214 = scmp.ne.s32.totalorder %s200, %s201
      %p215 = scmp.eq.s32.totalorder %s25, 1
      %p216 = por %p214, %p215
      %p218 = scmp.ne.s32.totalorder %s201, %s217
      %p219 = scmp.eq.s32.totalorder %s25, 0
      %p220 = por %p218, %p219
      %s221 = ssub.s32 %s27, %s34
      %p222 = scmp.eq.s32.totalorder %s221, 0
      %s224 = sadd.s32 %s223, 1
      %s225 = scalar_select %p222, %s223, %s224
      %p228 = pneg %p222
      %p229 = scmp.eq.s32.totalorder %s19, 1
      %p230 = por %p228, %p229
      %p231 = scmp.ne.s32.totalorder %s223, %s226
      %p232 = scmp.eq.s32.totalorder %s19, 0
      %p233 = por %p231, %p232
      %p234 = scmp.ne.s32.totalorder %s223, %s226
      %p235 = scmp.eq.s32.totalorder %s24, 1
      %p236 = por %p234, %p235
      %p237 = scmp.ne.s32.totalorder %s226, %s227
      %p238 = scmp.eq.s32.totalorder %s24, 0
      %p239 = por %p237, %p238
      %p240 = scmp.ne.s32.totalorder %s226, %s227
      %p241 = scmp.eq.s32.totalorder %s25, 1
      %p242 = por %p240, %p241
      %p244 = scmp.ne.s32.totalorder %s227, %s243
      %p245 = scmp.eq.s32.totalorder %s25, 0
      %p246 = por %p244, %p245
      %s247 = ssub.s32 %s27, %s34
      %p248 = scmp.eq.s32.totalorder %s247, 0
      %s250 = sadd.s32 %s249, 1
      %s251 = scalar_select %p248, %s249, %s250
      %p254 = pneg %p248
      %p255 = scmp.eq.s32.totalorder %s19, 1
      %p256 = por %p254, %p255
      %p257 = scmp.ne.s32.totalorder %s249, %s252
      %p258 = scmp.eq.s32.totalorder %s19, 0
      %p259 = por %p257, %p258
      %p260 = scmp.ne.s32.totalorder %s249, %s252
      %p261 = scmp.eq.s32.totalorder %s24, 1
      %p262 = por %p260, %p261
      %p263 = scmp.ne.s32.totalorder %s252, %s253
      %p264 = scmp.eq.s32.totalorder %s24, 0
      %p265 = por %p263, %p264
      %p266 = scmp.ne.s32.totalorder %s252, %s253
      %p267 = scmp.eq.s32.totalorder %s25, 1
      %p268 = por %p266, %p267
      %p270 = scmp.ne.s32.totalorder %s253, %s269
      %p271 = scmp.eq.s32.totalorder %s25, 0
      %p272 = por %p270, %p271
      %s274 = sadd.s32 %s273, 1
      %p277 = scmp.eq.s32.totalorder %s19, 1
      %p278 = scmp.ne.s32.totalorder %s273, %s275
      %p279 = scmp.eq.s32.totalorder %s19, 0
      %p280 = por %p278, %p279
      %p281 = scmp.ne.s32.totalorder %s273, %s275
      %p282 = scmp.eq.s32.totalorder %s24, 1
      %p283 = por %p281, %p282
      %p284 = scmp.ne.s32.totalorder %s275, %s276
      %p285 = scmp.eq.s32.totalorder %s24, 0
      %p286 = por %p284, %p285
      %p287 = scmp.ne.s32.totalorder %s275, %s276
      %p288 = scmp.eq.s32.totalorder %s25, 1
      %p289 = por %p287, %p288
      %p291 = scmp.ne.s32.totalorder %s276, %s290
      %p292 = scmp.eq.s32.totalorder %s25, 0
      %p293 = por %p291, %p292
      %s294 = ssub.s32 %s26, %s38
      %p295 = scmp.eq.s32.totalorder %s294, 0
      %s297 = sadd.s32 %s296, 1
      %s298 = scalar_select %p295, %s296, %s297
      %p301 = pneg %p295
      %p302 = scmp.eq.s32.totalorder %s19, 1
      %p303 = por %p301, %p302
      %p304 = scmp.ne.s32.totalorder %s296, %s299
      %p305 = scmp.eq.s32.totalorder %s19, 0
      %p306 = por %p304, %p305
      %p307 = scmp.ne.s32.totalorder %s296, %s299
      %p308 = scmp.eq.s32.totalorder %s24, 1
      %p309 = por %p307, %p308
      %p310 = scmp.ne.s32.totalorder %s299, %s300
      %p311 = scmp.eq.s32.totalorder %s24, 0
      %p312 = por %p310, %p311
      %p313 = scmp.ne.s32.totalorder %s299, %s300
      %p314 = scmp.eq.s32.totalorder %s25, 1
      %p315 = por %p313, %p314
      %p317 = scmp.ne.s32.totalorder %s300, %s316
      %p318 = scmp.eq.s32.totalorder %s25, 0
      %p319 = por %p317, %p318
      %p320 = scmp.le.s32.totalorder 1, %s19
      %p321 = scmp.lt.s32.totalorder %s19, 3
      %p322 = pnand %p320, %p321
      %p323 = pneg %p322
      // Predicated region
      $region9: #{tpu_custom_call.1} parent=5 // pred_check
        _
      $region10: #{tpu_custom_call.1} parent=5 // pred_check_branch
        %325 = sbr.rel (%p322) target = $region12
      $region11: #{tpu_custom_call.1} parent=5 // pred_region
        %s326 = ssub.s32 %s19, 1
        // Predicated region
        $region13: #{tpu_custom_call.1} parent=11 // pred_check
          %p327 = pneg %p57
        $region14: #{tpu_custom_call.1} parent=11 // pred_check_branch
          %329 = sbr.rel (%p327) target = $region16
        $region15: #{tpu_custom_call.1} parent=11 // pred_region
          %s330 = smul.u32 2, %s28
          %s332 = ssub.s32 256, 256
          %333 = vsyncadd [#allocation3], %s332
          %s334 = smul.addr %s330, 128
          %s335 = scalar_lea.hbm %s0, %s334
          %s336 = sshll.u32 [#allocation2], 4
          %s337 = int_to_ptr.vmem [resolvable:$true] %s336
          %342 = dma.hbm_to_vmem [thread:$0]  %s335, 256, %s337, [#allocation3], 128, 128, 8
        $region16: #{tpu_custom_call.1} parent=11 // pred_fallthru
          _
        // Predicated region
        $region17: #{tpu_custom_call.1} parent=11 // pred_check
          %p343 = pneg %p83
        $region18: #{tpu_custom_call.1} parent=11 // pred_check_branch
          %345 = sbr.rel (%p343) target = $region20
        $region19: #{tpu_custom_call.1} parent=11 // pred_region
          %s346 = smul.u32 2, %s28
          %s348 = ssub.s32 256, 256
          %349 = vsyncadd [#allocation6], %s348
          %s350 = smul.addr %s346, 128
          %s351 = scalar_lea.hbm %s1, %s350
          %s352 = sshll.u32 [#allocation5], 4
          %s353 = int_to_ptr.vmem [resolvable:$true] %s352
          %358 = dma.hbm_to_vmem [thread:$0]  %s351, 256, %s353, [#allocation6], 128, 128, 8
        $region20: #{tpu_custom_call.1} parent=11 // pred_fallthru
          _
        // Predicated region
        $region21: #{tpu_custom_call.1} parent=11 // pred_check
          %p359 = pneg %p286
        $region22: #{tpu_custom_call.1} parent=11 // pred_check_branch
          %361 = sbr.rel (%p359) target = $region24
        $region23: #{tpu_custom_call.1} parent=11 // pred_region
          %s363 = ssub.s32 32, 32
          %364 = vsyncadd [#allocation6], %s363
          %s366 = sshll.u32 [#allocation14], 4
          %s367 = int_to_ptr.vmem [resolvable:$true] %s366
          %369 = dma.hbm_to_vmem [thread:$0]  %s9, 32, %s367, [#allocation6]
        $region24: #{tpu_custom_call.1} parent=11 // pred_fallthru
          _
      $region12: #{tpu_custom_call.1} parent=5 // pred_fallthru
        _
      %p370 = scmp.lt.s32.totalorder %s19, 2
      // Predicated region
      $region25: #{tpu_custom_call.1} parent=5 // pred_check
        %p371 = pneg %p370
      $region26: #{tpu_custom_call.1} parent=5 // pred_check_branch
        %373 = sbr.rel (%p371) target = $region28
      $region27: #{tpu_custom_call.1} parent=5 // pred_region
        // Predicated region
        $region29: #{tpu_custom_call.1} parent=27 // pred_check
          %p374 = pneg %p103
        $region30: #{tpu_custom_call.1} parent=27 // pred_check_branch
          %376 = sbr.rel (%p374) target = $region32
        $region31: #{tpu_custom_call.1} parent=27 // pred_region
          %s377 = sand.u32 %s19, 1
          %s378 = scalar_lea.sflag [#allocation3], %s377
          %s379 = sand.u32 %s93, 1
          %s380 = smul.addr %s379, 16
          %s381 = scalar_lea.vmem [#allocation7], %s380
          %s383 = ssub.s32 256, 256
          %384 = vsyncadd %s378, %s383
          %s385 = smul.addr %s27, 4
          %s386 = smul.addr %s385, 64
          %s387 = scalar_lea.hbm %s2, %s386
          %s388 = sshll.u32 %s381, 4
          %s389 = int_to_ptr.vmem [resolvable:$true] %s388
          %394 = dma.hbm_to_vmem [thread:$0]  %s387, 256, %s389, %s378, 64, 64, 4
        $region32: #{tpu_custom_call.1} parent=27 // pred_fallthru
          _
        // Predicated region
        $region33: #{tpu_custom_call.1} parent=27 // pred_check
          %p395 = pneg %p129
        $region34: #{tpu_custom_call.1} parent=27 // pred_check_branch
          %397 = sbr.rel (%p395) target = $region36
        $region35: #{tpu_custom_call.1} parent=27 // pred_region
          %s398 = sand.u32 %s19, 1
          %s399 = scalar_lea.sflag [#allocation3], %s398
          %s400 = sand.u32 %s119, 1
          %s401 = smul.addr %s400, 16
          %s402 = scalar_lea.vmem [#allocation8], %s401
          %s404 = ssub.s32 256, 256
          %405 = vsyncadd %s399, %s404
          %s406 = smul.addr %s27, 4
          %s407 = smul.addr %s406, 64
          %s408 = scalar_lea.hbm %s3, %s407
          %s409 = sshll.u32 %s402, 4
          %s410 = int_to_ptr.vmem [resolvable:$true] %s409
          %415 = dma.hbm_to_vmem [thread:$0]  %s408, 256, %s410, %s399, 64, 64, 4
        $region36: #{tpu_custom_call.1} parent=27 // pred_fallthru
          _
        // Predicated region
        $region37: #{tpu_custom_call.1} parent=27 // pred_check
          %p416 = pneg %p155
        $region38: #{tpu_custom_call.1} parent=27 // pred_check_branch
          %418 = sbr.rel (%p416) target = $region40
        $region39: #{tpu_custom_call.1} parent=27 // pred_region
          %s419 = sand.u32 %s19, 1
          %s420 = scalar_lea.sflag [#allocation3], %s419
          %s421 = sand.u32 %s145, 1
          %s422 = smul.addr %s421, 16
          %s423 = scalar_lea.vmem [#allocation9], %s422
          %s425 = ssub.s32 256, 256
          %426 = vsyncadd %s420, %s425
          %s427 = smul.addr %s27, 4
          %s428 = smul.addr %s427, 64
          %s429 = scalar_lea.hbm %s4, %s428
          %s430 = sshll.u32 %s423, 4
          %s431 = int_to_ptr.vmem [resolvable:$true] %s430
          %436 = dma.hbm_to_vmem [thread:$0]  %s429, 256, %s431, %s420, 64, 64, 4
        $region40: #{tpu_custom_call.1} parent=27 // pred_fallthru
          _
        // Predicated region
        $region41: #{tpu_custom_call.1} parent=27 // pred_check
          %p437 = pneg %p181
        $region42: #{tpu_custom_call.1} parent=27 // pred_check_branch
          %439 = sbr.rel (%p437) target = $region44
        $region43: #{tpu_custom_call.1} parent=27 // pred_region
          %s440 = sand.u32 %s19, 1
          %s441 = scalar_lea.sflag [#allocation3], %s440
          %s442 = sand.u32 %s171, 1
          %s443 = smul.addr %s442, 16
          %s444 = scalar_lea.vmem [#allocation10], %s443
          %s446 = ssub.s32 256, 256
          %447 = vsyncadd %s441, %s446
          %s448 = smul.addr %s27, 4
          %s449 = smul.addr %s448, 64
          %s450 = scalar_lea.hbm %s5, %s449
          %s451 = sshll.u32 %s444, 4
          %s452 = int_to_ptr.vmem [resolvable:$true] %s451
          %457 = dma.hbm_to_vmem [thread:$0]  %s450, 256, %s452, %s441, 64, 64, 4
        $region44: #{tpu_custom_call.1} parent=27 // pred_fallthru
          _
        // Predicated region
        $region45: #{tpu_custom_call.1} parent=27 // pred_check
          %p458 = pneg %p207
        $region46: #{tpu_custom_call.1} parent=27 // pred_check_branch
          %460 = sbr.rel (%p458) target = $region48
        $region47: #{tpu_custom_call.1} parent=27 // pred_region
          %s461 = sand.u32 %s19, 1
          %s462 = scalar_lea.sflag [#allocation3], %s461
          %s463 = sand.u32 %s197, 1
          %s464 = smul.addr %s463, 32
          %s465 = scalar_lea.vmem [#allocation11], %s464
          %s467 = ssub.s32 512, 512
          %468 = vsyncadd %s462, %s467
          %s469 = smul.addr %s27, 8
          %s470 = smul.addr %s469, 64
          %s471 = scalar_lea.hbm %s6, %s470
          %s472 = sshll.u32 %s465, 4
          %s473 = int_to_ptr.vmem [resolvable:$true] %s472
          %478 = dma.hbm_to_vmem [thread:$0]  %s471, 512, %s473, %s462, 64, 64, 4
        $region48: #{tpu_custom_call.1} parent=27 // pred_fallthru
          _
        // Predicated region
        $region49: #{tpu_custom_call.1} parent=27 // pred_check
          %p479 = pneg %p233
        $region50: #{tpu_custom_call.1} parent=27 // pred_check_branch
          %481 = sbr.rel (%p479) target = $region52
        $region51: #{tpu_custom_call.1} parent=27 // pred_region
          %s482 = sand.u32 %s19, 1
          %s483 = scalar_lea.sflag [#allocation3], %s482
          %s484 = sand.u32 %s223, 1
          %s485 = smul.addr %s484, 16
          %s486 = scalar_lea.vmem [#allocation12], %s485
          %s488 = ssub.s32 256, 256
          %489 = vsyncadd %s483, %s488
          %s490 = smul.addr %s27, 2
          %s491 = smul.addr %s490, 128
          %s492 = scalar_lea.hbm %s7, %s491
          %s493 = sshll.u32 %s486, 4
          %s494 = int_to_ptr.vmem [resolvable:$true] %s493
          %499 = dma.hbm_to_vmem [thread:$0]  %s492, 256, %s494, %s483, 128, 128, 8
        $region52: #{tpu_custom_call.1} parent=27 // pred_fallthru
          _
        // Predicated region
        $region53: #{tpu_custom_call.1} parent=27 // pred_check
          %p500 = pneg %p259
        $region54: #{tpu_custom_call.1} parent=27 // pred_check_branch
          %502 = sbr.rel (%p500) target = $region56
        $region55: #{tpu_custom_call.1} parent=27 // pred_region
          %s503 = sand.u32 %s19, 1
          %s504 = scalar_lea.sflag [#allocation3], %s503
          %s505 = sand.u32 %s249, 1
          %s506 = scalar_lea.vmem [#allocation13], %s505
          %s508 = ssub.s32 16, 16
          %509 = vsyncadd %s504, %s508
          %s510 = smul.addr %s27, 16
          %s511 = scalar_lea.hbm %s8, %s510
          %s513 = sshll.u32 %s506, 4
          %s514 = int_to_ptr.vmem [resolvable:$true] %s513
          %516 = dma.hbm_to_vmem [thread:$0]  %s511, 16, %s514, %s504
        $region56: #{tpu_custom_call.1} parent=27 // pred_fallthru
          _
      $region28: #{tpu_custom_call.1} parent=5 // pred_fallthru
        _
      %p517 = scmp.le.s32.totalorder 1, %s19
      %p518 = scmp.lt.s32.totalorder %s19, 3
      %p519 = pnand %p517, %p518
      %p520 = pneg %p519
      // Predicated region
      $region57: #{tpu_custom_call.1} parent=5 // pred_check
        _
      $region58: #{tpu_custom_call.1} parent=5 // pred_check_branch
        %522 = sbr.rel (%p519) target = $region60
      $region59: #{tpu_custom_call.1} parent=5 // pred_region
        %s523 = ssub.s32 %s19, 1
        // Predicated region
        $region61: #{tpu_custom_call.1} parent=59 // pred_check
          %p524 = pneg %p57
        $region62: #{tpu_custom_call.1} parent=59 // pred_check_branch
          %526 = sbr.rel (%p524) target = $region64
        $region63: #{tpu_custom_call.1} parent=59 // pred_region
          %527 = dma.done [#allocation3], 256
        $region64: #{tpu_custom_call.1} parent=59 // pred_fallthru
          _
        // Predicated region
        $region65: #{tpu_custom_call.1} parent=59 // pred_check
          %p528 = pneg %p83
        $region66: #{tpu_custom_call.1} parent=59 // pred_check_branch
          %530 = sbr.rel (%p528) target = $region68
        $region67: #{tpu_custom_call.1} parent=59 // pred_region
          %531 = dma.done [#allocation6], 256
        $region68: #{tpu_custom_call.1} parent=59 // pred_fallthru
          _
        %s532 = sand.u32 %s24, 1
        %s533 = scalar_lea.sflag [#allocation3], %s532
        %s534 = sand.u32 %s96, 1
        %s535 = smul.addr %s534, 16
        %s536 = scalar_lea.vmem [#allocation7], %s535
        // Predicated region
        $region69: #{tpu_custom_call.1} parent=59 // pred_check
          %p537 = pneg %p109
        $region70: #{tpu_custom_call.1} parent=59 // pred_check_branch
          %539 = sbr.rel (%p537) target = $region72
        $region71: #{tpu_custom_call.1} parent=59 // pred_region
          %540 = dma.done %s533, 256
        $region72: #{tpu_custom_call.1} parent=59 // pred_fallthru
          _
        %s541 = sand.u32 %s24, 1
        %s542 = scalar_lea.sflag [#allocation3], %s541
        %s543 = sand.u32 %s122, 1
        %s544 = smul.addr %s543, 16
        %s545 = scalar_lea.vmem [#allocation8], %s544
        // Predicated region
        $region73: #{tpu_custom_call.1} parent=59 // pred_check
          %p546 = pneg %p135
        $region74: #{tpu_custom_call.1} parent=59 // pred_check_branch
          %548 = sbr.rel (%p546) target = $region76
        $region75: #{tpu_custom_call.1} parent=59 // pred_region
          %549 = dma.done %s542, 256
        $region76: #{tpu_custom_call.1} parent=59 // pred_fallthru
          _
        %s550 = sand.u32 %s24, 1
        %s551 = scalar_lea.sflag [#allocation3], %s550
        %s552 = sand.u32 %s148, 1
        %s553 = smul.addr %s552, 16
        %s554 = scalar_lea.vmem [#allocation9], %s553
        // Predicated region
        $region77: #{tpu_custom_call.1} parent=59 // pred_check
          %p555 = pneg %p161
        $region78: #{tpu_custom_call.1} parent=59 // pred_check_branch
          %557 = sbr.rel (%p555) target = $region80
        $region79: #{tpu_custom_call.1} parent=59 // pred_region
          %558 = dma.done %s551, 256
        $region80: #{tpu_custom_call.1} parent=59 // pred_fallthru
          _
        %s559 = sand.u32 %s24, 1
        %s560 = scalar_lea.sflag [#allocation3], %s559
        %s561 = sand.u32 %s174, 1
        %s562 = smul.addr %s561, 16
        %s563 = scalar_lea.vmem [#allocation10], %s562
        // Predicated region
        $region81: #{tpu_custom_call.1} parent=59 // pred_check
          %p564 = pneg %p187
        $region82: #{tpu_custom_call.1} parent=59 // pred_check_branch
          %566 = sbr.rel (%p564) target = $region84
        $region83: #{tpu_custom_call.1} parent=59 // pred_region
          %567 = dma.done %s560, 256
        $region84: #{tpu_custom_call.1} parent=59 // pred_fallthru
          _
        %s568 = sand.u32 %s24, 1
        %s569 = scalar_lea.sflag [#allocation3], %s568
        %s570 = sand.u32 %s200, 1
        %s571 = smul.addr %s570, 32
        %s572 = scalar_lea.vmem [#allocation11], %s571
        // Predicated region
        $region85: #{tpu_custom_call.1} parent=59 // pred_check
          %p573 = pneg %p213
        $region86: #{tpu_custom_call.1} parent=59 // pred_check_branch
          %575 = sbr.rel (%p573) target = $region88
        $region87: #{tpu_custom_call.1} parent=59 // pred_region
          %576 = dma.done %s569, 512
        $region88: #{tpu_custom_call.1} parent=59 // pred_fallthru
          _
        %s577 = sand.u32 %s24, 1
        %s578 = scalar_lea.sflag [#allocation3], %s577
        %s579 = sand.u32 %s226, 1
        %s580 = smul.addr %s579, 16
        %s581 = scalar_lea.vmem [#allocation12], %s580
        // Predicated region
        $region89: #{tpu_custom_call.1} parent=59 // pred_check
          %p582 = pneg %p239
        $region90: #{tpu_custom_call.1} parent=59 // pred_check_branch
          %584 = sbr.rel (%p582) target = $region92
        $region91: #{tpu_custom_call.1} parent=59 // pred_region
          %585 = dma.done %s578, 256
        $region92: #{tpu_custom_call.1} parent=59 // pred_fallthru
          _
        %s586 = sand.u32 %s24, 1
        %s587 = scalar_lea.sflag [#allocation3], %s586
        %s588 = sand.u32 %s252, 1
        %s589 = scalar_lea.vmem [#allocation13], %s588
        // Predicated region
        $region93: #{tpu_custom_call.1} parent=59 // pred_check
          %p590 = pneg %p265
        $region94: #{tpu_custom_call.1} parent=59 // pred_check_branch
          %592 = sbr.rel (%p590) target = $region96
        $region95: #{tpu_custom_call.1} parent=59 // pred_region
          %593 = dma.done %s587, 16
        $region96: #{tpu_custom_call.1} parent=59 // pred_fallthru
          _
        // Predicated region
        $region97: #{tpu_custom_call.1} parent=59 // pred_check
          %p594 = pneg %p286
        $region98: #{tpu_custom_call.1} parent=59 // pred_check_branch
          %596 = sbr.rel (%p594) target = $region100
        $region99: #{tpu_custom_call.1} parent=59 // pred_region
          %597 = dma.done [#allocation6], 32
        $region100: #{tpu_custom_call.1} parent=59 // pred_fallthru
          _
        %p598 = pneg %p57
        %p599 = pneg %p54
        %p600 = pneg %p83
        %p601 = pneg %p80
        %s602 = sand.u32 %s24, 1
        %s603 = scalar_lea.sflag [#allocation3], %s602
        %s604 = sand.u32 %s96, 1
        %s605 = smul.addr %s604, 16
        %s606 = scalar_lea.vmem [#allocation7], %s605
        %p607 = pneg %p109
        %p608 = pneg %p106
        %s609 = sand.u32 %s24, 1
        %s610 = scalar_lea.sflag [#allocation3], %s609
        %s611 = sand.u32 %s122, 1
        %s612 = smul.addr %s611, 16
        %s613 = scalar_lea.vmem [#allocation8], %s612
        %p614 = pneg %p135
        %p615 = pneg %p132
        %s616 = sand.u32 %s24, 1
        %s617 = scalar_lea.sflag [#allocation3], %s616
        %s618 = sand.u32 %s148, 1
        %s619 = smul.addr %s618, 16
        %s620 = scalar_lea.vmem [#allocation9], %s619
        %p621 = pneg %p161
        %p622 = pneg %p158
        %s623 = sand.u32 %s24, 1
        %s624 = scalar_lea.sflag [#allocation3], %s623
        %s625 = sand.u32 %s174, 1
        %s626 = smul.addr %s625, 16
        %s627 = scalar_lea.vmem [#allocation10], %s626
        %p628 = pneg %p187
        %p629 = pneg %p184
        %s630 = sand.u32 %s24, 1
        %s631 = scalar_lea.sflag [#allocation3], %s630
        %s632 = sand.u32 %s200, 1
        %s633 = smul.addr %s632, 32
        %s634 = scalar_lea.vmem [#allocation11], %s633
        %p635 = pneg %p213
        %p636 = pneg %p210
        %s637 = sand.u32 %s24, 1
        %s638 = scalar_lea.sflag [#allocation3], %s637
        %s639 = sand.u32 %s226, 1
        %s640 = smul.addr %s639, 16
        %s641 = scalar_lea.vmem [#allocation12], %s640
        %p642 = pneg %p239
        %p643 = pneg %p236
        %s644 = sand.u32 %s24, 1
        %s645 = scalar_lea.sflag [#allocation3], %s644
        %s646 = sand.u32 %s252, 1
        %s647 = scalar_lea.vmem [#allocation13], %s646
        %p648 = pneg %p265
        %p649 = pneg %p262
        %p650 = pneg %p286
        %p651 = pneg %p283
        %p652 = pneg %p312
        %p653 = pneg %p309
        %s654 = smul.u32 2, %s28
        %s655 = smul.u32 2, %s28
        %s656 = smul.u32 2, %s28
        %p658 = scmp.eq.s32.totalorder %s29, 0
        // Predicated region
        $region101: #{tpu_custom_call.1} parent=59 // pred_check
          %p659 = pneg %p658
        $region102: #{tpu_custom_call.1} parent=59 // pred_check_branch
          %661 = sbr.rel (%p659) target = $region104
        $region103: #{tpu_custom_call.1} parent=59 // pred_region
          %v662 = vld [vmem:[#allocation2] sm:$0xff]
          %v663 = vld [vmem:[#allocation2 + $0x8] sm:$0xff]
          %vm664 = vcmask 261120
          %665 = vst.msk [vmem:[#allocation15] sm:$0xff] %vm664, %v662
          %666 = vst.msk [vmem:[#allocation15 + $0x8] sm:$0xff] %vm664, %v663
        $region104: #{tpu_custom_call.1} parent=59 // pred_fallthru
          _
        %v667 = vld [vmem:[#allocation15] sm:$0xff]
        %v668 = vld [vmem:[#allocation15 + $0x8] sm:$0xff]
        %v669 = vld [vmem:[#allocation5] sm:$0xff]
        %v670 = vld [vmem:[#allocation5 + $0x8] sm:$0xff]
        %v671 = vld [vmem:[%s581] sm:$0xff]
        %v672 = vld [vmem:[%s581 + $0x8] sm:$0x1]
        %v673 = vadd.f32 %v667, %v669
        %v674 = vadd.f32 %v668, %v670
        %v675 = vpack.c.bf16 %v674, %v673
        %v676 = vpack.c.bf16 %v668, %v667
        %v677 = vld [vmem:[%s536] sm:$0xf]
        %v678 = vld [vmem:[%s536 + $0x4] sm:$0xf]
        %v679 = vld [vmem:[%s536 + $0x8] sm:$0xf]
        %v680 = vld [vmem:[%s536 + $0xc] sm:$0xf]
        %v685 = vunpack.c.l.b16 %v677
        %v686 = vunpack.c.l.b16 %v678
        %v687 = vunpack.c.l.b16 %v679
        %v688 = vunpack.c.l.b16 %v680
        %v689 = vpack.c.b16 %v686, %v685
        %v690 = vpack.c.b16 %v688, %v687
        %vm693 = vcmask 261120
        %v695 = vsel %vm693, %v675, 0
        %697 = vmatprep.subr.bf16.mxu0 0
        %698 = vmatpush1.bf16.msra.mxu0 %v689
        %699 = vmatprep.subr.bf16.mxu0 0
        %700 = vmatpush1.bf16.msra.mxu0 %v690
        %701 = vmatprep.subr.bf16.mxu0 0
        %702 = vmatpush1.bf16.msra.mxu0 0
        %703 = vmatprep.subr.bf16.mxu0 0
        %704 = vmatpush1.bf16.msra.mxu0 0
        %705 = vmatprep.subr.bf16.mxu0 0
        %706 = vmatpush1.bf16.msra.mxu0 0
        %707 = vmatprep.subr.bf16.mxu0 0
        %708 = vmatpush1.bf16.msra.mxu0 0
        %709 = vmatprep.subr.bf16.mxu0 0
        %710 = vmatpush1.bf16.msra.mxu0 0
        %711 = vmatprep.subr.bf16.mxu0 0
        %712 = vmatpush1.bf16.msra.mxu0 0
        %713 = vmatprep.subr.bf16.mxu0 0
        %714 = vmatpush1.bf16.msra.mxu0 0
        %715 = vmatprep.subr.bf16.mxu0 0
        %716 = vmatpush1.bf16.msra.mxu0 0
        %717 = vmatprep.subr.bf16.mxu0 0
        %718 = vmatpush1.bf16.msra.mxu0 0
        %719 = vmatprep.subr.bf16.mxu0 0
        %720 = vmatpush1.bf16.msra.mxu0 0
        %721 = vmatprep.subr.bf16.mxu0 0
        %722 = vmatpush1.bf16.msra.mxu0 0
        %723 = vmatprep.subr.bf16.mxu0 0
        %724 = vmatpush1.bf16.msra.mxu0 0
        %725 = vmatprep.subr.bf16.mxu0 0
        %726 = vmatpush1.bf16.msra.mxu0 0
        %727 = vmatprep.subr.bf16.mxu0 0
        %728 = vmatpush1.bf16.msra.mxu0 0
        %729 = vmatprep.mubr.bf16.mxu0 0
        %730 = vmatmul.mubr.bf16.gmra.mrb[0].mxu0 %v695
        %v731 = vpop.f32.mrb[0].mxu0
        %v732 = vadd.f32 0.0, %v731
        %v733 = vpop.f32.mrb[0].mxu0
        %v734 = vpop.f32.mrb[0].mxu0
        %v735 = vadd.f32 0.0, %v734
        %v736 = vpop.f32.mrb[0].mxu0
        %737 = vdwg.mxu0
        %v738 = vlaneseq
        %v739 = vshrl.u32 %v738, 7
        %v740 = vsub.s32 0, %v739
        %v741 = vrot.slane %v671, %v740
        %v742 = vadd.f32 %v732, %v741
        %v743 = vadd.f32 %v735, %v741
        %v744 = vpack.c.bf16 %v742, %v742
        %v745 = vpack.c.bf16 %v743, %v743
        %v746 = vlaneseq
        %v747 = vshrl.u32 %v746, 7
        %v748 = vsub.s32 1, %v747
        %v749 = vrot.slane %v671, %v748
        %751 = vrot.lane.b32.xlu0 %v749, 32
        %v752 = vpop.permute.xlu0 %751
        %v754 = vadd.f32 %v732, %v752
        %v755 = vadd.f32 %v735, %v752
        %v756 = vpack.c.bf16 %v754, %v754
        %v757 = vpack.c.bf16 %v755, %v755
        %v758 = vld [vmem:[%s545] sm:$0xf]
        %v759 = vld [vmem:[%s545 + $0x4] sm:$0xf]
        %v760 = vld [vmem:[%s545 + $0x8] sm:$0xf]
        %v761 = vld [vmem:[%s545 + $0xc] sm:$0xf]
        %v762 = vlaneseq
        %v763 = vshrl.u32 %v762, 7
        %v764 = vsub.s32 2, %v763
        %v765 = vrot.slane %v671, %v764
        %v770 = vunpack.c.l.b16 %v758
        %v771 = vunpack.c.l.b16 %v759
        %v772 = vunpack.c.l.b16 %v760
        %v773 = vunpack.c.l.b16 %v761
        %v774 = vpack.c.b16 %v771, %v770
        %v775 = vpack.c.b16 %v773, %v772
        %v779 = vsel %vm693, %v676, 0
        %781 = vmatprep.subr.bf16.mxu0 0
        %782 = vmatpush1.bf16.msra.mxu0 %v774
        %783 = vmatprep.subr.bf16.mxu0 0
        %784 = vmatpush1.bf16.msra.mxu0 %v775
        %785 = vmatprep.subr.bf16.mxu0 0
        %786 = vmatpush1.bf16.msra.mxu0 0
        %787 = vmatprep.subr.bf16.mxu0 0
        %788 = vmatpush1.bf16.msra.mxu0 0
        %789 = vmatprep.subr.bf16.mxu0 0
        %790 = vmatpush1.bf16.msra.mxu0 0
        %791 = vmatprep.subr.bf16.mxu0 0
        %792 = vmatpush1.bf16.msra.mxu0 0
        %793 = vmatprep.subr.bf16.mxu0 0
        %794 = vmatpush1.bf16.msra.mxu0 0
        %795 = vmatprep.subr.bf16.mxu0 0
        %796 = vmatpush1.bf16.msra.mxu0 0
        %797 = vmatprep.subr.bf16.mxu0 0
        %798 = vmatpush1.bf16.msra.mxu0 0
        %799 = vmatprep.subr.bf16.mxu0 0
        %800 = vmatpush1.bf16.msra.mxu0 0
        %801 = vmatprep.subr.bf16.mxu0 0
        %802 = vmatpush1.bf16.msra.mxu0 0
        %803 = vmatprep.subr.bf16.mxu0 0
        %804 = vmatpush1.bf16.msra.mxu0 0
        %805 = vmatprep.subr.bf16.mxu0 0
        %806 = vmatpush1.bf16.msra.mxu0 0
        %807 = vmatprep.subr.bf16.mxu0 0
        %808 = vmatpush1.bf16.msra.mxu0 0
        %809 = vmatprep.subr.bf16.mxu0 0
        %810 = vmatpush1.bf16.msra.mxu0 0
        %811 = vmatprep.subr.bf16.mxu0 0
        %812 = vmatpush1.bf16.msra.mxu0 0
        %813 = vmatprep.mubr.bf16.mxu0 0
        %814 = vmatmul.mubr.bf16.gmra.mrb[0].mxu0 %v779
        %v815 = vpop.f32.mrb[0].mxu0
        %v816 = vadd.f32 %v765, %v815
        %v817 = vpop.f32.mrb[0].mxu0
        %v818 = vpop.f32.mrb[0].mxu0
        %v819 = vadd.f32 %v765, %v818
        %v820 = vpop.f32.mrb[0].mxu0
        %821 = vdwg.mxu0
        %v822 = vpack.c.bf16 %v816, %v816
        %v823 = vpack.c.bf16 %v819, %v819
        %825 = vrot.lane.b32.xlu0 %v756, 96
        %v826 = vpop.permute.xlu0 %825
        %vm827 = vcmask 64512
        %v829 = vsel %vm827, %v744, 0
        %v832 = vsel %vm827, %v826, 0
        %834 = vmatprep.subr.bf16.mxu0 0
        %835 = vmatpush1.bf16.xpose.msra.mxu0 %v832
        %836 = vmatprep.subr.bf16.mxu0 0
        %837 = vmatpush1.bf16.xpose.msra.mxu0 0
        %838 = vmatprep.subr.bf16.mxu0 0
        %839 = vmatpush1.bf16.xpose.msra.mxu0 0
        %840 = vmatprep.subr.bf16.mxu0 0
        %841 = vmatpush1.bf16.xpose.msra.mxu0 0
        %842 = vmatprep.subr.bf16.mxu0 0
        %843 = vmatpush1.bf16.xpose.msra.mxu0 0
        %844 = vmatprep.subr.bf16.mxu0 0
        %845 = vmatpush1.bf16.xpose.msra.mxu0 0
        %846 = vmatprep.subr.bf16.mxu0 0
        %847 = vmatpush1.bf16.xpose.msra.mxu0 0
        %848 = vmatprep.subr.bf16.mxu0 0
        %849 = vmatpush1.bf16.xpose.msra.mxu0 0
        %850 = vmatprep.subr.bf16.mxu0 0
        %851 = vmatpush1.bf16.xpose.msra.mxu0 0
        %852 = vmatprep.subr.bf16.mxu0 0
        %853 = vmatpush1.bf16.xpose.msra.mxu0 0
        %854 = vmatprep.subr.bf16.mxu0 0
        %855 = vmatpush1.bf16.xpose.msra.mxu0 0
        %856 = vmatprep.subr.bf16.mxu0 0
        %857 = vmatpush1.bf16.xpose.msra.mxu0 0
        %858 = vmatprep.subr.bf16.mxu0 0
        %859 = vmatpush1.bf16.xpose.msra.mxu0 0
        %860 = vmatprep.subr.bf16.mxu0 0
        %861 = vmatpush1.bf16.xpose.msra.mxu0 0
        %862 = vmatprep.subr.bf16.mxu0 0
        %863 = vmatpush1.bf16.xpose.msra.mxu0 0
        %864 = vmatprep.subr.bf16.mxu0 0
        %865 = vmatpush1.bf16.xpose.msra.mxu0 0
        %866 = vmatprep.mubr.bf16.mxu0 0
        %867 = vmatmul.mubr.bf16.gmra.mrb[0].mxu0 %v829
        %v868 = vpop.f32.mrb[0].mxu0
        %v869 = vadd.f32 0.0, %v868
        %v870 = vpop.f32.mrb[0].mxu0
        %v871 = vpop.f32.mrb[0].mxu0
        %v872 = vpop.f32.mrb[0].mxu0
        %873 = vdwg.mxu0
        %875 = vrot.lane.b32.xlu0 %v757, 96
        %v876 = vpop.permute.xlu0 %875
        %v878 = vsel %vm827, %v745, 0
        %v881 = vsel %vm827, %v876, 0
        %883 = vmatprep.subr.bf16.mxu0 0
        %884 = vmatpush1.bf16.xpose.msra.mxu0 %v881
        %885 = vmatprep.subr.bf16.mxu0 0
        %886 = vmatpush1.bf16.xpose.msra.mxu0 0
        %887 = vmatprep.subr.bf16.mxu0 0
        %888 = vmatpush1.bf16.xpose.msra.mxu0 0
        %889 = vmatprep.subr.bf16.mxu0 0
        %890 = vmatpush1.bf16.xpose.msra.mxu0 0
        %891 = vmatprep.subr.bf16.mxu0 0
        %892 = vmatpush1.bf16.xpose.msra.mxu0 0
        %893 = vmatprep.subr.bf16.mxu0 0
        %894 = vmatpush1.bf16.xpose.msra.mxu0 0
        %895 = vmatprep.subr.bf16.mxu0 0
        %896 = vmatpush1.bf16.xpose.msra.mxu0 0
        %897 = vmatprep.subr.bf16.mxu0 0
        %898 = vmatpush1.bf16.xpose.msra.mxu0 0
        %899 = vmatprep.subr.bf16.mxu0 0
        %900 = vmatpush1.bf16.xpose.msra.mxu0 0
        %901 = vmatprep.subr.bf16.mxu0 0
        %902 = vmatpush1.bf16.xpose.msra.mxu0 0
        %903 = vmatprep.subr.bf16.mxu0 0
        %904 = vmatpush1.bf16.xpose.msra.mxu0 0
        %905 = vmatprep.subr.bf16.mxu0 0
        %906 = vmatpush1.bf16.xpose.msra.mxu0 0
        %907 = vmatprep.subr.bf16.mxu0 0
        %908 = vmatpush1.bf16.xpose.msra.mxu0 0
        %909 = vmatprep.subr.bf16.mxu0 0
        %910 = vmatpush1.bf16.xpose.msra.mxu0 0
        %911 = vmatprep.subr.bf16.mxu0 0
        %912 = vmatpush1.bf16.xpose.msra.mxu0 0
        %913 = vmatprep.subr.bf16.mxu0 0
        %914 = vmatpush1.bf16.xpose.msra.mxu0 0
        %915 = vmatprep.mubr.bf16.mxu0 0
        %916 = vmatmul.mubr.bf16.gmra.mrb[0].mxu0 %v878
        %v917 = vpop.f32.mrb[0].mxu0
        %v918 = vadd.f32 0.0, %v917
        %v919 = vpop.f32.mrb[0].mxu0
        %v920 = vpop.f32.mrb[0].mxu0
        %v921 = vpop.f32.mrb[0].mxu0
        %922 = vdwg.mxu0
        %v923 = vsel %vm827, %v869, -inf
        %924 = vmax.xlane.f32.xlu0 %v923
        %v925 = vpop.xlane.xlu0 %924
        %v926 = vsel %vm827, %v918, -inf
        %927 = vmax.xlane.f32.xlu0 %v926
        %v928 = vpop.xlane.xlu0 %927
        %v929 = vsub.f32 %v869, %v925
        %v930 = vsub.f32 %v918, %v928
        %v931 = vmul.f32 %v929, 1.442695
        %v932 = vpow.pop %v931
        %v933 = vmul.f32 %v930, 1.442695
        %v934 = vpow.pop %v933
        %v935 = vsel %vm827, %v932, 0.0
        %936 = vadd.xlane.f32.xlu0 %v935
        %v937 = vpop.xlane.xlu0 %936
        %v938 = vsel %vm827, %v934, 0.0
        %939 = vadd.xlane.f32.xlu0 %v938
        %v940 = vpop.xlane.xlu0 %939
        %v941 = vrcp.pop %v937
        %v942 = vrcp.pop %v940
        %v943 = vmul.f32 %v932, %v941
        %v944 = vmul.f32 %v934, %v942
        %v945 = vpack.c.bf16 %v943, %v943
        %v946 = vpack.c.bf16 %v944, %v944
        %v948 = vsel %vm827, %v945, 0
        %vm950 = vcmask 1043456
        %v952 = vsel %vm950, %v822, 0
        %954 = vmatprep.subr.bf16.mxu0 0
        %955 = vmatpush1.bf16.msra.mxu0 %v952
        %956 = vmatprep.subr.bf16.mxu0 0
        %957 = vmatpush1.bf16.msra.mxu0 0
        %958 = vmatprep.subr.bf16.mxu0 0
        %959 = vmatpush1.bf16.msra.mxu0 0
        %960 = vmatprep.subr.bf16.mxu0 0
        %961 = vmatpush1.bf16.msra.mxu0 0
        %962 = vmatprep.subr.bf16.mxu0 0
        %963 = vmatpush1.bf16.msra.mxu0 0
        %964 = vmatprep.subr.bf16.mxu0 0
        %965 = vmatpush1.bf16.msra.mxu0 0
        %966 = vmatprep.subr.bf16.mxu0 0
        %967 = vmatpush1.bf16.msra.mxu0 0
        %968 = vmatprep.subr.bf16.mxu0 0
        %969 = vmatpush1.bf16.msra.mxu0 0
        %970 = vmatprep.subr.bf16.mxu0 0
        %971 = vmatpush1.bf16.msra.mxu0 0
        %972 = vmatprep.subr.bf16.mxu0 0
        %973 = vmatpush1.bf16.msra.mxu0 0
        %974 = vmatprep.subr.bf16.mxu0 0
        %975 = vmatpush1.bf16.msra.mxu0 0
        %976 = vmatprep.subr.bf16.mxu0 0
        %977 = vmatpush1.bf16.msra.mxu0 0
        %978 = vmatprep.subr.bf16.mxu0 0
        %979 = vmatpush1.bf16.msra.mxu0 0
        %980 = vmatprep.subr.bf16.mxu0 0
        %981 = vmatpush1.bf16.msra.mxu0 0
        %982 = vmatprep.subr.bf16.mxu0 0
        %983 = vmatpush1.bf16.msra.mxu0 0
        %984 = vmatprep.subr.bf16.mxu0 0
        %985 = vmatpush1.bf16.msra.mxu0 0
        %986 = vmatprep.mubr.bf16.mxu0 0
        %987 = vmatmul.mubr.bf16.gmra.mrb[0].mxu0 %v948
        %v988 = vpop.f32.mrb[0].mxu0
        %v989 = vadd.f32 0.0, %v988
        %v990 = vpop.f32.mrb[0].mxu0
        %v991 = vpop.f32.mrb[0].mxu0
        %v992 = vpop.f32.mrb[0].mxu0
        %993 = vdwg.mxu0
        %v995 = vsel %vm827, %v946, 0
        %v998 = vsel %vm950, %v823, 0
        %1000 = vmatprep.subr.bf16.mxu0 0
        %1001 = vmatpush1.bf16.msra.mxu0 %v998
        %1002 = vmatprep.subr.bf16.mxu0 0
        %1003 = vmatpush1.bf16.msra.mxu0 0
        %1004 = vmatprep.subr.bf16.mxu0 0
        %1005 = vmatpush1.bf16.msra.mxu0 0
        %1006 = vmatprep.subr.bf16.mxu0 0
        %1007 = vmatpush1.bf16.msra.mxu0 0
        %1008 = vmatprep.subr.bf16.mxu0 0
        %1009 = vmatpush1.bf16.msra.mxu0 0
        %1010 = vmatprep.subr.bf16.mxu0 0
        %1011 = vmatpush1.bf16.msra.mxu0 0
        %1012 = vmatprep.subr.bf16.mxu0 0
        %1013 = vmatpush1.bf16.msra.mxu0 0
        %1014 = vmatprep.subr.bf16.mxu0 0
        %1015 = vmatpush1.bf16.msra.mxu0 0
        %1016 = vmatprep.subr.bf16.mxu0 0
        %1017 = vmatpush1.bf16.msra.mxu0 0
        %1018 = vmatprep.subr.bf16.mxu0 0
        %1019 = vmatpush1.bf16.msra.mxu0 0
        %1020 = vmatprep.subr.bf16.mxu0 0
        %1021 = vmatpush1.bf16.msra.mxu0 0
        %1022 = vmatprep.subr.bf16.mxu0 0
        %1023 = vmatpush1.bf16.msra.mxu0 0
        %1024 = vmatprep.subr.bf16.mxu0 0
        %1025 = vmatpush1.bf16.msra.mxu0 0
        %1026 = vmatprep.subr.bf16.mxu0 0
        %1027 = vmatpush1.bf16.msra.mxu0 0
        %1028 = vmatprep.subr.bf16.mxu0 0
        %1029 = vmatpush1.bf16.msra.mxu0 0
        %1030 = vmatprep.subr.bf16.mxu0 0
        %1031 = vmatpush1.bf16.msra.mxu0 0
        %1032 = vmatprep.mubr.bf16.mxu0 0
        %1033 = vmatmul.mubr.bf16.gmra.mrb[0].mxu0 %v995
        %v1034 = vpop.f32.mrb[0].mxu0
        %v1035 = vadd.f32 0.0, %v1034
        %v1036 = vpop.f32.mrb[0].mxu0
        %v1037 = vpop.f32.mrb[0].mxu0
        %v1038 = vpop.f32.mrb[0].mxu0
        %1039 = vdwg.mxu0
        %v1040 = vpack.c.bf16 %v989, %v989
        %v1041 = vpack.c.bf16 %v1035, %v1035
        %1043 = vrot.lane.b32.xlu0 %v744, 120
        %v1044 = vpop.permute.xlu0 %1043
        %1045 = vrot.lane.b32.xlu0 %v756, 88
        %v1046 = vpop.permute.xlu0 %1045
        %v1048 = vsel %vm827, %v1044, 0
        %v1051 = vsel %vm827, %v1046, 0
        %1053 = vmatprep.subr.bf16.mxu0 0
        %1054 = vmatpush1.bf16.xpose.msra.mxu0 %v1051
        %1055 = vmatprep.subr.bf16.mxu0 0
        %1056 = vmatpush1.bf16.xpose.msra.mxu0 0
        %1057 = vmatprep.subr.bf16.mxu0 0
        %1058 = vmatpush1.bf16.xpose.msra.mxu0 0
        %1059 = vmatprep.subr.bf16.mxu0 0
        %1060 = vmatpush1.bf16.xpose.msra.mxu0 0
        %1061 = vmatprep.subr.bf16.mxu0 0
        %1062 = vmatpush1.bf16.xpose.msra.mxu0 0
        %1063 = vmatprep.subr.bf16.mxu0 0
        %1064 = vmatpush1.bf16.xpose.msra.mxu0 0
        %1065 = vmatprep.subr.bf16.mxu0 0
        %1066 = vmatpush1.bf16.xpose.msra.mxu0 0
        %1067 = vmatprep.subr.bf16.mxu0 0
        %1068 = vmatpush1.bf16.xpose.msra.mxu0 0
        %1069 = vmatprep.subr.bf16.mxu0 0
        %1070 = vmatpush1.bf16.xpose.msra.mxu0 0
        %1071 = vmatprep.subr.bf16.mxu0 0
        %1072 = vmatpush1.bf16.xpose.msra.mxu0 0
        %1073 = vmatprep.subr.bf16.mxu0 0
        %1074 = vmatpush1.bf16.xpose.msra.mxu0 0
        %1075 = vmatprep.subr.bf16.mxu0 0
        %1076 = vmatpush1.bf16.xpose.msra.mxu0 0
        %1077 = vmatprep.subr.bf16.mxu0 0
        %1078 = vmatpush1.bf16.xpose.msra.mxu0 0
        %1079 = vmatprep.subr.bf16.mxu0 0
        %1080 = vmatpush1.bf16.xpose.msra.mxu0 0
        %1081 = vmatprep.subr.bf16.mxu0 0
        %1082 = vmatpush1.bf16.xpose.msra.mxu0 0
        %1083 = vmatprep.subr.bf16.mxu0 0
        %1084 = vmatpush1.bf16.xpose.msra.mxu0 0
        %1085 = vmatprep.mubr.bf16.mxu0 0
        %1086 = vmatmul.mubr.bf16.gmra.mrb[0].mxu0 %v1048
        %v1087 = vpop.f32.mrb[0].mxu0
        %v1088 = vadd.f32 0.0, %v1087
        %v1089 = vpop.f32.mrb[0].mxu0
        %v1090 = vpop.f32.mrb[0].mxu0
        %v1091 = vpop.f32.mrb[0].mxu0
        %1092 = vdwg.mxu0
        %1094 = vrot.lane.b32.xlu0 %v745, 120
        %v1095 = vpop.permute.xlu0 %1094
        %1096 = vrot.lane.b32.xlu0 %v757, 88
        %v1097 = vpop.permute.xlu0 %1096
        %v1099 = vsel %vm827, %v1095, 0
        %v1102 = vsel %vm827, %v1097, 0
        %1104 = vmatprep.subr.bf16.mxu0 0
        %1105 = vmatpush1.bf16.xpose.msra.mxu0 %v1102
        %1106 = vmatprep.subr.bf16.mxu0 0
        %1107 = vmatpush1.bf16.xpose.msra.mxu0 0
        %1108 = vmatprep.subr.bf16.mxu0 0
        %1109 = vmatpush1.bf16.xpose.msra.mxu0 0
        %1110 = vmatprep.subr.bf16.mxu0 0
        %1111 = vmatpush1.bf16.xpose.msra.mxu0 0
        %1112 = vmatprep.subr.bf16.mxu0 0
        %1113 = vmatpush1.bf16.xpose.msra.mxu0 0
        %1114 = vmatprep.subr.bf16.mxu0 0
        %1115 = vmatpush1.bf16.xpose.msra.mxu0 0
        %1116 = vmatprep.subr.bf16.mxu0 0
        %1117 = vmatpush1.bf16.xpose.msra.mxu0 0
        %1118 = vmatprep.subr.bf16.mxu0 0
        %1119 = vmatpush1.bf16.xpose.msra.mxu0 0
        %1120 = vmatprep.subr.bf16.mxu0 0
        %1121 = vmatpush1.bf16.xpose.msra.mxu0 0
        %1122 = vmatprep.subr.bf16.mxu0 0
        %1123 = vmatpush1.bf16.xpose.msra.mxu0 0
        %1124 = vmatprep.subr.bf16.mxu0 0
        %1125 = vmatpush1.bf16.xpose.msra.mxu0 0
        %1126 = vmatprep.subr.bf16.mxu0 0
        %1127 = vmatpush1.bf16.xpose.msra.mxu0 0
        %1128 = vmatprep.subr.bf16.mxu0 0
        %1129 = vmatpush1.bf16.xpose.msra.mxu0 0
        %1130 = vmatprep.subr.bf16.mxu0 0
        %1131 = vmatpush1.bf16.xpose.msra.mxu0 0
        %1132 = vmatprep.subr.bf16.mxu0 0
        %1133 = vmatpush1.bf16.xpose.msra.mxu0 0
        %1134 = vmatprep.subr.bf16.mxu0 0
        %1135 = vmatpush1.bf16.xpose.msra.mxu0 0
        %1136 = vmatprep.mubr.bf16.mxu0 0
        %1137 = vmatmul.mubr.bf16.gmra.mrb[0].mxu0 %v1099
        %v1138 = vpop.f32.mrb[0].mxu0
        %v1139 = vadd.f32 0.0, %v1138
        %v1140 = vpop.f32.mrb[0].mxu0
        %v1141 = vpop.f32.mrb[0].mxu0
        %v1142 = vpop.f32.mrb[0].mxu0
        %1143 = vdwg.mxu0
        %v1144 = vsel %vm827, %v1088, -inf
        %1145 = vmax.xlane.f32.xlu0 %v1144
        %v1146 = vpop.xlane.xlu0 %1145
        %v1147 = vsel %vm827, %v1139, -inf
        %1148 = vmax.xlane.f32.xlu0 %v1147
        %v1149 = vpop.xlane.xlu0 %1148
        %v1150 = vsub.f32 %v1088, %v1146
        %v1151 = vsub.f32 %v1139, %v1149
        %v1152 = vmul.f32 %v1150, 1.442695
        %v1153 = vpow.pop %v1152
        %v1154 = vmul.f32 %v1151, 1.442695
        %v1155 = vpow.pop %v1154
        %v1156 = vsel %vm827, %v1153, 0.0
        %1157 = vadd.xlane.f32.xlu0 %v1156
        %v1158 = vpop.xlane.xlu0 %1157
        %v1159 = vsel %vm827, %v1155, 0.0
        %1160 = vadd.xlane.f32.xlu0 %v1159
        %v1161 = vpop.xlane.xlu0 %1160
        %v1162 = vrcp.pop %v1158
        %v1163 = vrcp.pop %v1161
        %v1164 = vmul.f32 %v1153, %v1162
        %v1165 = vmul.f32 %v1155, %v1163
        %v1166 = vpack.c.bf16 %v1164, %v1164
        %v1167 = vpack.c.bf16 %v1165, %v1165
        %1169 = vrot.lane.b32.xlu0 %v822, 120
        %v1170 = vpop.permute.xlu0 %1169
        %v1172 = vsel %vm827, %v1166, 0
        %v1175 = vsel %vm950, %v1170, 0
        %1177 = vmatprep.subr.bf16.mxu0 0
        %1178 = vmatpush1.bf16.msra.mxu0 %v1175
        %1179 = vmatprep.subr.bf16.mxu0 0
        %1180 = vmatpush1.bf16.msra.mxu0 0
        %1181 = vmatprep.subr.bf16.mxu0 0
        %1182 = vmatpush1.bf16.msra.mxu0 0
        %1183 = vmatprep.subr.bf16.mxu0 0
        %1184 = vmatpush1.bf16.msra.mxu0 0
        %1185 = vmatprep.subr.bf16.mxu0 0
        %1186 = vmatpush1.bf16.msra.mxu0 0
        %1187 = vmatprep.subr.bf16.mxu0 0
        %1188 = vmatpush1.bf16.msra.mxu0 0
        %1189 = vmatprep.subr.bf16.mxu0 0
        %1190 = vmatpush1.bf16.msra.mxu0 0
        %1191 = vmatprep.subr.bf16.mxu0 0
        %1192 = vmatpush1.bf16.msra.mxu0 0
        %1193 = vmatprep.subr.bf16.mxu0 0
        %1194 = vmatpush1.bf16.msra.mxu0 0
        %1195 = vmatprep.subr.bf16.mxu0 0
        %1196 = vmatpush1.bf16.msra.mxu0 0
        %1197 = vmatprep.subr.bf16.mxu0 0
        %1198 = vmatpush1.bf16.msra.mxu0 0
        %1199 = vmatprep.subr.bf16.mxu0 0
        %1200 = vmatpush1.bf16.msra.mxu0 0
        %1201 = vmatprep.subr.bf16.mxu0 0
        %1202 = vmatpush1.bf16.msra.mxu0 0
        %1203 = vmatprep.subr.bf16.mxu0 0
        %1204 = vmatpush1.bf16.msra.mxu0 0
        %1205 = vmatprep.subr.bf16.mxu0 0
        %1206 = vmatpush1.bf16.msra.mxu0 0
        %1207 = vmatprep.subr.bf16.mxu0 0
        %1208 = vmatpush1.bf16.msra.mxu0 0
        %1209 = vmatprep.mubr.bf16.mxu0 0
        %1210 = vmatmul.mubr.bf16.gmra.mrb[0].mxu0 %v1172
        %v1211 = vpop.f32.mrb[0].mxu0
        %v1212 = vadd.f32 0.0, %v1211
        %v1213 = vpop.f32.mrb[0].mxu0
        %v1214 = vpop.f32.mrb[0].mxu0
        %v1215 = vpop.f32.mrb[0].mxu0
        %1216 = vdwg.mxu0
        %1218 = vrot.lane.b32.xlu0 %v823, 120
        %v1219 = vpop.permute.xlu0 %1218
        %v1221 = vsel %vm827, %v1167, 0
        %v1224 = vsel %vm950, %v1219, 0
        %1226 = vmatprep.subr.bf16.mxu0 0
        %1227 = vmatpush1.bf16.msra.mxu0 %v1224
        %1228 = vmatprep.subr.bf16.mxu0 0
        %1229 = vmatpush1.bf16.msra.mxu0 0
        %1230 = vmatprep.subr.bf16.mxu0 0
        %1231 = vmatpush1.bf16.msra.mxu0 0
        %1232 = vmatprep.subr.bf16.mxu0 0
        %1233 = vmatpush1.bf16.msra.mxu0 0
        %1234 = vmatprep.subr.bf16.mxu0 0
        %1235 = vmatpush1.bf16.msra.mxu0 0
        %1236 = vmatprep.subr.bf16.mxu0 0
        %1237 = vmatpush1.bf16.msra.mxu0 0
        %1238 = vmatprep.subr.bf16.mxu0 0
        %1239 = vmatpush1.bf16.msra.mxu0 0
        %1240 = vmatprep.subr.bf16.mxu0 0
        %1241 = vmatpush1.bf16.msra.mxu0 0
        %1242 = vmatprep.subr.bf16.mxu0 0
        %1243 = vmatpush1.bf16.msra.mxu0 0
        %1244 = vmatprep.subr.bf16.mxu0 0
        %1245 = vmatpush1.bf16.msra.mxu0 0
        %1246 = vmatprep.subr.bf16.mxu0 0
        %1247 = vmatpush1.bf16.msra.mxu0 0
        %1248 = vmatprep.subr.bf16.mxu0 0
        %1249 = vmatpush1.bf16.msra.mxu0 0
        %1250 = vmatprep.subr.bf16.mxu0 0
        %1251 = vmatpush1.bf16.msra.mxu0 0
        %1252 = vmatprep.subr.bf16.mxu0 0
        %1253 = vmatpush1.bf16.msra.mxu0 0
        %1254 = vmatprep.subr.bf16.mxu0 0
        %1255 = vmatpush1.bf16.msra.mxu0 0
        %1256 = vmatprep.subr.bf16.mxu0 0
        %1257 = vmatpush1.bf16.msra.mxu0 0
        %1258 = vmatprep.mubr.bf16.mxu0 0
        %1259 = vmatmul.mubr.bf16.gmra.mrb[0].mxu0 %v1221
        %v1260 = vpop.f32.mrb[0].mxu0
        %v1261 = vadd.f32 0.0, %v1260
        %v1262 = vpop.f32.mrb[0].mxu0
        %v1263 = vpop.f32.mrb[0].mxu0
        %v1264 = vpop.f32.mrb[0].mxu0
        %1265 = vdwg.mxu0
        %v1266 = vpack.c.bf16 %v1212, %v1212
        %v1267 = vpack.c.bf16 %v1261, %v1261
        %1268 = vrot.lane.b32.xlu0 %v744, 112
        %v1269 = vpop.permute.xlu0 %1268
        %1270 = vrot.lane.b32.xlu0 %v756, 80
        %v1271 = vpop.permute.xlu0 %1270
        %v1273 = vsel %vm827, %v1269, 0
        %v1276 = vsel %vm827, %v1271, 0
        %1278 = vmatprep.subr.bf16.mxu0 0
        %1279 = vmatpush1.bf16.xpose.msra.mxu0 %v1276
        %1280 = vmatprep.subr.bf16.mxu0 0
        %1281 = vmatpush1.bf16.xpose.msra.mxu0 0
        %1282 = vmatprep.subr.bf16.mxu0 0
        %1283 = vmatpush1.bf16.xpose.msra.mxu0 0
        %1284 = vmatprep.subr.bf16.mxu0 0
        %1285 = vmatpush1.bf16.xpose.msra.mxu0 0
        %1286 = vmatprep.subr.bf16.mxu0 0
        %1287 = vmatpush1.bf16.xpose.msra.mxu0 0
        %1288 = vmatprep.subr.bf16.mxu0 0
        %1289 = vmatpush1.bf16.xpose.msra.mxu0 0
        %1290 = vmatprep.subr.bf16.mxu0 0
        %1291 = vmatpush1.bf16.xpose.msra.mxu0 0
        %1292 = vmatprep.subr.bf16.mxu0 0
        %1293 = vmatpush1.bf16.xpose.msra.mxu0 0
        %1294 = vmatprep.subr.bf16.mxu0 0
        %1295 = vmatpush1.bf16.xpose.msra.mxu0 0
        %1296 = vmatprep.subr.bf16.mxu0 0
        %1297 = vmatpush1.bf16.xpose.msra.mxu0 0
        %1298 = vmatprep.subr.bf16.mxu0 0
        %1299 = vmatpush1.bf16.xpose.msra.mxu0 0
        %1300 = vmatprep.subr.bf16.mxu0 0
        %1301 = vmatpush1.bf16.xpose.msra.mxu0 0
        %1302 = vmatprep.subr.bf16.mxu0 0
        %1303 = vmatpush1.bf16.xpose.msra.mxu0 0
        %1304 = vmatprep.subr.bf16.mxu0 0
        %1305 = vmatpush1.bf16.xpose.msra.mxu0 0
        %1306 = vmatprep.subr.bf16.mxu0 0
        %1307 = vmatpush1.bf16.xpose.msra.mxu0 0
        %1308 = vmatprep.subr.bf16.mxu0 0
        %1309 = vmatpush1.bf16.xpose.msra.mxu0 0
        %1310 = vmatprep.mubr.bf16.mxu0 0
        %1311 = vmatmul.mubr.bf16.gmra.mrb[0].mxu0 %v1273
        %v1312 = vpop.f32.mrb[0].mxu0
        %v1313 = vadd.f32 0.0, %v1312
        %v1314 = vpop.f32.mrb[0].mxu0
        %v1315 = vpop.f32.mrb[0].mxu0
        %v1316 = vpop.f32.mrb[0].mxu0
        %1317 = vdwg.mxu0
        %1318 = vrot.lane.b32.xlu0 %v745, 112
        %v1319 = vpop.permute.xlu0 %1318
        %1320 = vrot.lane.b32.xlu0 %v757, 80
        %v1321 = vpop.permute.xlu0 %1320
        %v1323 = vsel %vm827, %v1319, 0
        %v1326 = vsel %vm827, %v1321, 0
        %1328 = vmatprep.subr.bf16.mxu0 0
        %1329 = vmatpush1.bf16.xpose.msra.mxu0 %v1326
        %1330 = vmatprep.subr.bf16.mxu0 0
        %1331 = vmatpush1.bf16.xpose.msra.mxu0 0
        %1332 = vmatprep.subr.bf16.mxu0 0
        %1333 = vmatpush1.bf16.xpose.msra.mxu0 0
        %1334 = vmatprep.subr.bf16.mxu0 0
        %1335 = vmatpush1.bf16.xpose.msra.mxu0 0
        %1336 = vmatprep.subr.bf16.mxu0 0
        %1337 = vmatpush1.bf16.xpose.msra.mxu0 0
        %1338 = vmatprep.subr.bf16.mxu0 0
        %1339 = vmatpush1.bf16.xpose.msra.mxu0 0
        %1340 = vmatprep.subr.bf16.mxu0 0
        %1341 = vmatpush1.bf16.xpose.msra.mxu0 0
        %1342 = vmatprep.subr.bf16.mxu0 0
        %1343 = vmatpush1.bf16.xpose.msra.mxu0 0
        %1344 = vmatprep.subr.bf16.mxu0 0
        %1345 = vmatpush1.bf16.xpose.msra.mxu0 0
        %1346 = vmatprep.subr.bf16.mxu0 0
        %1347 = vmatpush1.bf16.xpose.msra.mxu0 0
        %1348 = vmatprep.subr.bf16.mxu0 0
        %1349 = vmatpush1.bf16.xpose.msra.mxu0 0
        %1350 = vmatprep.subr.bf16.mxu0 0
        %1351 = vmatpush1.bf16.xpose.msra.mxu0 0
        %1352 = vmatprep.subr.bf16.mxu0 0
        %1353 = vmatpush1.bf16.xpose.msra.mxu0 0
        %1354 = vmatprep.subr.bf16.mxu0 0
        %1355 = vmatpush1.bf16.xpose.msra.mxu0 0
        %1356 = vmatprep.subr.bf16.mxu0 0
        %1357 = vmatpush1.bf16.xpose.msra.mxu0 0
        %1358 = vmatprep.subr.bf16.mxu0 0
        %1359 = vmatpush1.bf16.xpose.msra.mxu0 0
        %1360 = vmatprep.mubr.bf16.mxu0 0
        %1361 = vmatmul.mubr.bf16.gmra.mrb[0].mxu0 %v1323
        %v1362 = vpop.f32.mrb[0].mxu0
        %v1363 = vadd.f32 0.0, %v1362
        %v1364 = vpop.f32.mrb[0].mxu0
        %v1365 = vpop.f32.mrb[0].mxu0
        %v1366 = vpop.f32.mrb[0].mxu0
        %1367 = vdwg.mxu0
        %v1368 = vsel %vm827, %v1313, -inf
        %1369 = vmax.xlane.f32.xlu0 %v1368
        %v1370 = vpop.xlane.xlu0 %1369
        %v1371 = vsel %vm827, %v1363, -inf
        %1372 = vmax.xlane.f32.xlu0 %v1371
        %v1373 = vpop.xlane.xlu0 %1372
        %v1374 = vsub.f32 %v1313, %v1370
        %v1375 = vsub.f32 %v1363, %v1373
        %v1376 = vmul.f32 %v1374, 1.442695
        %v1377 = vpow.pop %v1376
        %v1378 = vmul.f32 %v1375, 1.442695
        %v1379 = vpow.pop %v1378
        %v1380 = vsel %vm827, %v1377, 0.0
        %1381 = vadd.xlane.f32.xlu0 %v1380
        %v1382 = vpop.xlane.xlu0 %1381
        %v1383 = vsel %vm827, %v1379, 0.0
        %1384 = vadd.xlane.f32.xlu0 %v1383
        %v1385 = vpop.xlane.xlu0 %1384
        %v1386 = vrcp.pop %v1382
        %v1387 = vrcp.pop %v1385
        %v1388 = vmul.f32 %v1377, %v1386
        %v1389 = vmul.f32 %v1379, %v1387
        %v1390 = vpack.c.bf16 %v1388, %v1388
        %v1391 = vpack.c.bf16 %v1389, %v1389
        %1392 = vrot.lane.b32.xlu0 %v822, 112
        %v1393 = vpop.permute.xlu0 %1392
        %v1395 = vsel %vm827, %v1390, 0
        %v1398 = vsel %vm950, %v1393, 0
        %1400 = vmatprep.subr.bf16.mxu0 0
        %1401 = vmatpush1.bf16.msra.mxu0 %v1398
        %1402 = vmatprep.subr.bf16.mxu0 0
        %1403 = vmatpush1.bf16.msra.mxu0 0
        %1404 = vmatprep.subr.bf16.mxu0 0
        %1405 = vmatpush1.bf16.msra.mxu0 0
        %1406 = vmatprep.subr.bf16.mxu0 0
        %1407 = vmatpush1.bf16.msra.mxu0 0
        %1408 = vmatprep.subr.bf16.mxu0 0
        %1409 = vmatpush1.bf16.msra.mxu0 0
        %1410 = vmatprep.subr.bf16.mxu0 0
        %1411 = vmatpush1.bf16.msra.mxu0 0
        %1412 = vmatprep.subr.bf16.mxu0 0
        %1413 = vmatpush1.bf16.msra.mxu0 0
        %1414 = vmatprep.subr.bf16.mxu0 0
        %1415 = vmatpush1.bf16.msra.mxu0 0
        %1416 = vmatprep.subr.bf16.mxu0 0
        %1417 = vmatpush1.bf16.msra.mxu0 0
        %1418 = vmatprep.subr.bf16.mxu0 0
        %1419 = vmatpush1.bf16.msra.mxu0 0
        %1420 = vmatprep.subr.bf16.mxu0 0
        %1421 = vmatpush1.bf16.msra.mxu0 0
        %1422 = vmatprep.subr.bf16.mxu0 0
        %1423 = vmatpush1.bf16.msra.mxu0 0
        %1424 = vmatprep.subr.bf16.mxu0 0
        %1425 = vmatpush1.bf16.msra.mxu0 0
        %1426 = vmatprep.subr.bf16.mxu0 0
        %1427 = vmatpush1.bf16.msra.mxu0 0
        %1428 = vmatprep.subr.bf16.mxu0 0
        %1429 = vmatpush1.bf16.msra.mxu0 0
        %1430 = vmatprep.subr.bf16.mxu0 0
        %1431 = vmatpush1.bf16.msra.mxu0 0
        %1432 = vmatprep.mubr.bf16.mxu0 0
        %1433 = vmatmul.mubr.bf16.gmra.mrb[0].mxu0 %v1395
        %v1434 = vpop.f32.mrb[0].mxu0
        %v1435 = vadd.f32 0.0, %v1434
        %v1436 = vpop.f32.mrb[0].mxu0
        %v1437 = vpop.f32.mrb[0].mxu0
        %v1438 = vpop.f32.mrb[0].mxu0
        %1439 = vdwg.mxu0
        %1440 = vrot.lane.b32.xlu0 %v823, 112
        %v1441 = vpop.permute.xlu0 %1440
        %v1443 = vsel %vm827, %v1391, 0
        %v1446 = vsel %vm950, %v1441, 0
        %1448 = vmatprep.subr.bf16.mxu0 0
        %1449 = vmatpush1.bf16.msra.mxu0 %v1446
        %1450 = vmatprep.subr.bf16.mxu0 0
        %1451 = vmatpush1.bf16.msra.mxu0 0
        %1452 = vmatprep.subr.bf16.mxu0 0
        %1453 = vmatpush1.bf16.msra.mxu0 0
        %1454 = vmatprep.subr.bf16.mxu0 0
        %1455 = vmatpush1.bf16.msra.mxu0 0
        %1456 = vmatprep.subr.bf16.mxu0 0
        %1457 = vmatpush1.bf16.msra.mxu0 0
        %1458 = vmatprep.subr.bf16.mxu0 0
        %1459 = vmatpush1.bf16.msra.mxu0 0
        %1460 = vmatprep.subr.bf16.mxu0 0
        %1461 = vmatpush1.bf16.msra.mxu0 0
        %1462 = vmatprep.subr.bf16.mxu0 0
        %1463 = vmatpush1.bf16.msra.mxu0 0
        %1464 = vmatprep.subr.bf16.mxu0 0
        %1465 = vmatpush1.bf16.msra.mxu0 0
        %1466 = vmatprep.subr.bf16.mxu0 0
        %1467 = vmatpush1.bf16.msra.mxu0 0
        %1468 = vmatprep.subr.bf16.mxu0 0
        %1469 = vmatpush1.bf16.msra.mxu0 0
        %1470 = vmatprep.subr.bf16.mxu0 0
        %1471 = vmatpush1.bf16.msra.mxu0 0
        %1472 = vmatprep.subr.bf16.mxu0 0
        %1473 = vmatpush1.bf16.msra.mxu0 0
        %1474 = vmatprep.subr.bf16.mxu0 0
        %1475 = vmatpush1.bf16.msra.mxu0 0
        %1476 = vmatprep.subr.bf16.mxu0 0
        %1477 = vmatpush1.bf16.msra.mxu0 0
        %1478 = vmatprep.subr.bf16.mxu0 0
        %1479 = vmatpush1.bf16.msra.mxu0 0
        %1480 = vmatprep.mubr.bf16.mxu0 0
        %1481 = vmatmul.mubr.bf16.gmra.mrb[0].mxu0 %v1443
        %v1482 = vpop.f32.mrb[0].mxu0
        %v1483 = vadd.f32 0.0, %v1482
        %v1484 = vpop.f32.mrb[0].mxu0
        %v1485 = vpop.f32.mrb[0].mxu0
        %v1486 = vpop.f32.mrb[0].mxu0
        %1487 = vdwg.mxu0
        %v1488 = vpack.c.bf16 %v1435, %v1435
        %v1489 = vpack.c.bf16 %v1483, %v1483
        %1490 = vrot.lane.b32.xlu0 %v744, 104
        %v1491 = vpop.permute.xlu0 %1490
        %1492 = vrot.lane.b32.xlu0 %v756, 72
        %v1493 = vpop.permute.xlu0 %1492
        %v1495 = vsel %vm827, %v1491, 0
        %v1498 = vsel %vm827, %v1493, 0
        %1500 = vmatprep.subr.bf16.mxu0 0
        %1501 = vmatpush1.bf16.xpose.msra.mxu0 %v1498
        %1502 = vmatprep.subr.bf16.mxu0 0
        %1503 = vmatpush1.bf16.xpose.msra.mxu0 0
        %1504 = vmatprep.subr.bf16.mxu0 0
        %1505 = vmatpush1.bf16.xpose.msra.mxu0 0
        %1506 = vmatprep.subr.bf16.mxu0 0
        %1507 = vmatpush1.bf16.xpose.msra.mxu0 0
        %1508 = vmatprep.subr.bf16.mxu0 0
        %1509 = vmatpush1.bf16.xpose.msra.mxu0 0
        %1510 = vmatprep.subr.bf16.mxu0 0
        %1511 = vmatpush1.bf16.xpose.msra.mxu0 0
        %1512 = vmatprep.subr.bf16.mxu0 0
        %1513 = vmatpush1.bf16.xpose.msra.mxu0 0
        %1514 = vmatprep.subr.bf16.mxu0 0
        %1515 = vmatpush1.bf16.xpose.msra.mxu0 0
        %1516 = vmatprep.subr.bf16.mxu0 0
        %1517 = vmatpush1.bf16.xpose.msra.mxu0 0
        %1518 = vmatprep.subr.bf16.mxu0 0
        %1519 = vmatpush1.bf16.xpose.msra.mxu0 0
        %1520 = vmatprep.subr.bf16.mxu0 0
        %1521 = vmatpush1.bf16.xpose.msra.mxu0 0
        %1522 = vmatprep.subr.bf16.mxu0 0
        %1523 = vmatpush1.bf16.xpose.msra.mxu0 0
        %1524 = vmatprep.subr.bf16.mxu0 0
        %1525 = vmatpush1.bf16.xpose.msra.mxu0 0
        %1526 = vmatprep.subr.bf16.mxu0 0
        %1527 = vmatpush1.bf16.xpose.msra.mxu0 0
        %1528 = vmatprep.subr.bf16.mxu0 0
        %1529 = vmatpush1.bf16.xpose.msra.mxu0 0
        %1530 = vmatprep.subr.bf16.mxu0 0
        %1531 = vmatpush1.bf16.xpose.msra.mxu0 0
        %1532 = vmatprep.mubr.bf16.mxu0 0
        %1533 = vmatmul.mubr.bf16.gmra.mrb[0].mxu0 %v1495
        %v1534 = vpop.f32.mrb[0].mxu0
        %v1535 = vadd.f32 0.0, %v1534
        %v1536 = vpop.f32.mrb[0].mxu0
        %v1537 = vpop.f32.mrb[0].mxu0
        %v1538 = vpop.f32.mrb[0].mxu0
        %1539 = vdwg.mxu0
        %1540 = vrot.lane.b32.xlu0 %v745, 104
        %v1541 = vpop.permute.xlu0 %1540
        %1542 = vrot.lane.b32.xlu0 %v757, 72
        %v1543 = vpop.permute.xlu0 %1542
        %v1545 = vsel %vm827, %v1541, 0
        %v1548 = vsel %vm827, %v1543, 0
        %1550 = vmatprep.subr.bf16.mxu0 0
        %1551 = vmatpush1.bf16.xpose.msra.mxu0 %v1548
        %1552 = vmatprep.subr.bf16.mxu0 0
        %1553 = vmatpush1.bf16.xpose.msra.mxu0 0
        %1554 = vmatprep.subr.bf16.mxu0 0
        %1555 = vmatpush1.bf16.xpose.msra.mxu0 0
        %1556 = vmatprep.subr.bf16.mxu0 0
        %1557 = vmatpush1.bf16.xpose.msra.mxu0 0
        %1558 = vmatprep.subr.bf16.mxu0 0
        %1559 = vmatpush1.bf16.xpose.msra.mxu0 0
        %1560 = vmatprep.subr.bf16.mxu0 0
        %1561 = vmatpush1.bf16.xpose.msra.mxu0 0
        %1562 = vmatprep.subr.bf16.mxu0 0
        %1563 = vmatpush1.bf16.xpose.msra.mxu0 0
        %1564 = vmatprep.subr.bf16.mxu0 0
        %1565 = vmatpush1.bf16.xpose.msra.mxu0 0
        %1566 = vmatprep.subr.bf16.mxu0 0
        %1567 = vmatpush1.bf16.xpose.msra.mxu0 0
        %1568 = vmatprep.subr.bf16.mxu0 0
        %1569 = vmatpush1.bf16.xpose.msra.mxu0 0
        %1570 = vmatprep.subr.bf16.mxu0 0
        %1571 = vmatpush1.bf16.xpose.msra.mxu0 0
        %1572 = vmatprep.subr.bf16.mxu0 0
        %1573 = vmatpush1.bf16.xpose.msra.mxu0 0
        %1574 = vmatprep.subr.bf16.mxu0 0
        %1575 = vmatpush1.bf16.xpose.msra.mxu0 0
        %1576 = vmatprep.subr.bf16.mxu0 0
        %1577 = vmatpush1.bf16.xpose.msra.mxu0 0
        %1578 = vmatprep.subr.bf16.mxu0 0
        %1579 = vmatpush1.bf16.xpose.msra.mxu0 0
        %1580 = vmatprep.subr.bf16.mxu0 0
        %1581 = vmatpush1.bf16.xpose.msra.mxu0 0
        %1582 = vmatprep.mubr.bf16.mxu0 0
        %1583 = vmatmul.mubr.bf16.gmra.mrb[0].mxu0 %v1545
        %v1584 = vpop.f32.mrb[0].mxu0
        %v1585 = vadd.f32 0.0, %v1584
        %v1586 = vpop.f32.mrb[0].mxu0
        %v1587 = vpop.f32.mrb[0].mxu0
        %v1588 = vpop.f32.mrb[0].mxu0
        %1589 = vdwg.mxu0
        %v1590 = vsel %vm827, %v1535, -inf
        %1591 = vmax.xlane.f32.xlu0 %v1590
        %v1592 = vpop.xlane.xlu0 %1591
        %v1593 = vsel %vm827, %v1585, -inf
        %1594 = vmax.xlane.f32.xlu0 %v1593
        %v1595 = vpop.xlane.xlu0 %1594
        %v1596 = vsub.f32 %v1535, %v1592
        %v1597 = vsub.f32 %v1585, %v1595
        %v1598 = vmul.f32 %v1596, 1.442695
        %v1599 = vpow.pop %v1598
        %v1600 = vmul.f32 %v1597, 1.442695
        %v1601 = vpow.pop %v1600
        %v1602 = vsel %vm827, %v1599, 0.0
        %1603 = vadd.xlane.f32.xlu0 %v1602
        %v1604 = vpop.xlane.xlu0 %1603
        %v1605 = vsel %vm827, %v1601, 0.0
        %1606 = vadd.xlane.f32.xlu0 %v1605
        %v1607 = vpop.xlane.xlu0 %1606
        %v1608 = vrcp.pop %v1604
        %v1609 = vrcp.pop %v1607
        %v1610 = vmul.f32 %v1599, %v1608
        %v1611 = vmul.f32 %v1601, %v1609
        %v1612 = vpack.c.bf16 %v1610, %v1610
        %v1613 = vpack.c.bf16 %v1611, %v1611
        %1614 = vrot.lane.b32.xlu0 %v822, 104
        %v1615 = vpop.permute.xlu0 %1614
        %v1617 = vsel %vm827, %v1612, 0
        %v1620 = vsel %vm950, %v1615, 0
        %1622 = vmatprep.subr.bf16.mxu0 0
        %1623 = vmatpush1.bf16.msra.mxu0 %v1620
        %1624 = vmatprep.subr.bf16.mxu0 0
        %1625 = vmatpush1.bf16.msra.mxu0 0
        %1626 = vmatprep.subr.bf16.mxu0 0
        %1627 = vmatpush1.bf16.msra.mxu0 0
        %1628 = vmatprep.subr.bf16.mxu0 0
        %1629 = vmatpush1.bf16.msra.mxu0 0
        %1630 = vmatprep.subr.bf16.mxu0 0
        %1631 = vmatpush1.bf16.msra.mxu0 0
        %1632 = vmatprep.subr.bf16.mxu0 0
        %1633 = vmatpush1.bf16.msra.mxu0 0
        %1634 = vmatprep.subr.bf16.mxu0 0
        %1635 = vmatpush1.bf16.msra.mxu0 0
        %1636 = vmatprep.subr.bf16.mxu0 0
        %1637 = vmatpush1.bf16.msra.mxu0 0
        %1638 = vmatprep.subr.bf16.mxu0 0
        %1639 = vmatpush1.bf16.msra.mxu0 0
        %1640 = vmatprep.subr.bf16.mxu0 0
        %1641 = vmatpush1.bf16.msra.mxu0 0
        %1642 = vmatprep.subr.bf16.mxu0 0
        %1643 = vmatpush1.bf16.msra.mxu0 0
        %1644 = vmatprep.subr.bf16.mxu0 0
        %1645 = vmatpush1.bf16.msra.mxu0 0
        %1646 = vmatprep.subr.bf16.mxu0 0
        %1647 = vmatpush1.bf16.msra.mxu0 0
        %1648 = vmatprep.subr.bf16.mxu0 0
        %1649 = vmatpush1.bf16.msra.mxu0 0
        %1650 = vmatprep.subr.bf16.mxu0 0
        %1651 = vmatpush1.bf16.msra.mxu0 0
        %1652 = vmatprep.subr.bf16.mxu0 0
        %1653 = vmatpush1.bf16.msra.mxu0 0
        %1654 = vmatprep.mubr.bf16.mxu0 0
        %1655 = vmatmul.mubr.bf16.gmra.mrb[0].mxu0 %v1617
        %v1656 = vpop.f32.mrb[0].mxu0
        %v1657 = vadd.f32 0.0, %v1656
        %v1658 = vpop.f32.mrb[0].mxu0
        %v1659 = vpop.f32.mrb[0].mxu0
        %v1660 = vpop.f32.mrb[0].mxu0
        %1661 = vdwg.mxu0
        %1662 = vrot.lane.b32.xlu0 %v823, 104
        %v1663 = vpop.permute.xlu0 %1662
        %v1665 = vsel %vm827, %v1613, 0
        %v1668 = vsel %vm950, %v1663, 0
        %1670 = vmatprep.subr.bf16.mxu0 0
        %1671 = vmatpush1.bf16.msra.mxu0 %v1668
        %1672 = vmatprep.subr.bf16.mxu0 0
        %1673 = vmatpush1.bf16.msra.mxu0 0
        %1674 = vmatprep.subr.bf16.mxu0 0
        %1675 = vmatpush1.bf16.msra.mxu0 0
        %1676 = vmatprep.subr.bf16.mxu0 0
        %1677 = vmatpush1.bf16.msra.mxu0 0
        %1678 = vmatprep.subr.bf16.mxu0 0
        %1679 = vmatpush1.bf16.msra.mxu0 0
        %1680 = vmatprep.subr.bf16.mxu0 0
        %1681 = vmatpush1.bf16.msra.mxu0 0
        %1682 = vmatprep.subr.bf16.mxu0 0
        %1683 = vmatpush1.bf16.msra.mxu0 0
        %1684 = vmatprep.subr.bf16.mxu0 0
        %1685 = vmatpush1.bf16.msra.mxu0 0
        %1686 = vmatprep.subr.bf16.mxu0 0
        %1687 = vmatpush1.bf16.msra.mxu0 0
        %1688 = vmatprep.subr.bf16.mxu0 0
        %1689 = vmatpush1.bf16.msra.mxu0 0
        %1690 = vmatprep.subr.bf16.mxu0 0
        %1691 = vmatpush1.bf16.msra.mxu0 0
        %1692 = vmatprep.subr.bf16.mxu0 0
        %1693 = vmatpush1.bf16.msra.mxu0 0
        %1694 = vmatprep.subr.bf16.mxu0 0
        %1695 = vmatpush1.bf16.msra.mxu0 0
        %1696 = vmatprep.subr.bf16.mxu0 0
        %1697 = vmatpush1.bf16.msra.mxu0 0
        %1698 = vmatprep.subr.bf16.mxu0 0
        %1699 = vmatpush1.bf16.msra.mxu0 0
        %1700 = vmatprep.subr.bf16.mxu0 0
        %1701 = vmatpush1.bf16.msra.mxu0 0
        %1702 = vmatprep.mubr.bf16.mxu0 0
        %1703 = vmatmul.mubr.bf16.gmra.mrb[0].mxu0 %v1665
        %v1704 = vpop.f32.mrb[0].mxu0
        %v1705 = vadd.f32 0.0, %v1704
        %v1706 = vpop.f32.mrb[0].mxu0
        %v1707 = vpop.f32.mrb[0].mxu0
        %v1708 = vpop.f32.mrb[0].mxu0
        %1709 = vdwg.mxu0
        %v1710 = vpack.c.bf16 %v1657, %v1657
        %v1711 = vpack.c.bf16 %v1705, %v1705
        %1714 = vrot.lane.b32.xlu0 %v1266, 8
        %v1715 = vpop.permute.xlu0 %1714
        %1716 = vrot.lane.b32.xlu0 %v1267, 8
        %v1717 = vpop.permute.xlu0 %1716
        %1720 = vrot.lane.b32.xlu0 %v1488, 16
        %v1721 = vpop.permute.xlu0 %1720
        %1722 = vrot.lane.b32.xlu0 %v1489, 16
        %v1723 = vpop.permute.xlu0 %1722
        %1726 = vrot.lane.b32.xlu0 %v1710, 24
        %v1727 = vpop.permute.xlu0 %1726
        %1728 = vrot.lane.b32.xlu0 %v1711, 24
        %v1729 = vpop.permute.xlu0 %1728
        %v1732 = vsel %vm827, %v1040, %v1715
        %v1735 = vsel %vm827, %v1041, %v1717
        %vm1736 = vcmask 130048
        %v1738 = vsel %vm1736, %v1732, %v1721
        %v1740 = vsel %vm1736, %v1735, %v1723
        %vm1741 = vcmask 195584
        %v1743 = vsel %vm1741, %v1738, %v1727
        %v1745 = vsel %vm1741, %v1740, %v1729
        %v1746 = vld [vmem:[%s554] sm:$0xf]
        %v1747 = vld [vmem:[%s554 + $0x4] sm:$0xf]
        %v1748 = vld [vmem:[%s554 + $0x8] sm:$0xf]
        %v1749 = vld [vmem:[%s554 + $0xc] sm:$0xf]
        %v1750 = vlaneseq
        %v1751 = vshrl.u32 %v1750, 7
        %v1752 = vsub.s32 3, %v1751
        %v1753 = vrot.slane %v671, %v1752
        %v1756 = vunpack.c.l.b16 %v1743
        %v1757 = vunpack.c.l.b16 %v1745
        %v1758 = vpack.c.b16 %v1757, %v1756
        %v1763 = vunpack.c.l.b16 %v1746
        %v1764 = vunpack.c.l.b16 %v1747
        %v1765 = vunpack.c.l.b16 %v1748
        %v1766 = vunpack.c.l.b16 %v1749
        %v1767 = vpack.c.b16 %v1764, %v1763
        %v1768 = vpack.c.b16 %v1766, %v1765
        %v1772 = vsel %vm693, %v1758, 0
        %1774 = vmatprep.subr.bf16.mxu0 0
        %1775 = vmatpush1.bf16.msra.mxu0 %v1767
        %1776 = vmatprep.subr.bf16.mxu0 0
        %1777 = vmatpush1.bf16.msra.mxu0 %v1768
        %1778 = vmatprep.subr.bf16.mxu0 0
        %1779 = vmatpush1.bf16.msra.mxu0 0
        %1780 = vmatprep.subr.bf16.mxu0 0
        %1781 = vmatpush1.bf16.msra.mxu0 0
        %1782 = vmatprep.subr.bf16.mxu0 0
        %1783 = vmatpush1.bf16.msra.mxu0 0
        %1784 = vmatprep.subr.bf16.mxu0 0
        %1785 = vmatpush1.bf16.msra.mxu0 0
        %1786 = vmatprep.subr.bf16.mxu0 0
        %1787 = vmatpush1.bf16.msra.mxu0 0
        %1788 = vmatprep.subr.bf16.mxu0 0
        %1789 = vmatpush1.bf16.msra.mxu0 0
        %1790 = vmatprep.subr.bf16.mxu0 0
        %1791 = vmatpush1.bf16.msra.mxu0 0
        %1792 = vmatprep.subr.bf16.mxu0 0
        %1793 = vmatpush1.bf16.msra.mxu0 0
        %1794 = vmatprep.subr.bf16.mxu0 0
        %1795 = vmatpush1.bf16.msra.mxu0 0
        %1796 = vmatprep.subr.bf16.mxu0 0
        %1797 = vmatpush1.bf16.msra.mxu0 0
        %1798 = vmatprep.subr.bf16.mxu0 0
        %1799 = vmatpush1.bf16.msra.mxu0 0
        %1800 = vmatprep.subr.bf16.mxu0 0
        %1801 = vmatpush1.bf16.msra.mxu0 0
        %1802 = vmatprep.subr.bf16.mxu0 0
        %1803 = vmatpush1.bf16.msra.mxu0 0
        %1804 = vmatprep.subr.bf16.mxu0 0
        %1805 = vmatpush1.bf16.msra.mxu0 0
        %1806 = vmatprep.mubr.bf16.mxu0 0
        %1807 = vmatmul.mubr.bf16.gmra.mrb[0].mxu0 %v1772
        %v1808 = vpop.f32.mrb[0].mxu0
        %v1809 = vadd.f32 %v1753, %v1808
        %v1810 = vpop.f32.mrb[0].mxu0
        %v1811 = vpop.f32.mrb[0].mxu0
        %v1812 = vadd.f32 %v1753, %v1811
        %v1813 = vpop.f32.mrb[0].mxu0
        %1814 = vdwg.mxu0
        %v1815 = vadd.f32 %v667, %v1809
        %v1816 = vadd.f32 %v668, %v1812
        %v1817 = vsel %vm693, %v1815, 0.0
        %1818 = vadd.xlane.f32.xlu0 %v1817
        %v1819 = vpop.xlane.xlu0 %1818
        %v1820 = vsel %vm693, %v1816, 0.0
        %1821 = vadd.xlane.f32.xlu0 %v1820
        %v1822 = vpop.xlane.xlu0 %1821
        %v1823 = vrcp.pop 32.0
        %v1824 = vmul.f32 %v1819, %v1823
        %v1825 = vmul.f32 %v1822, %v1823
        %v1826 = vsub.f32 %v1815, %v1824
        %v1827 = vsub.f32 %v1816, %v1825
        %v1828 = vmul.f32 %v1826, %v1826
        %v1829 = vmul.f32 %v1827, %v1827
        %v1830 = vsel %vm693, %v1828, 0.0
        %1831 = vadd.xlane.f32.xlu0 %v1830
        %v1832 = vpop.xlane.xlu0 %1831
        %v1833 = vsel %vm693, %v1829, 0.0
        %1834 = vadd.xlane.f32.xlu0 %v1833
        %v1835 = vpop.xlane.xlu0 %1834
        %v1836 = vmul.f32 %v1832, %v1823
        %v1837 = vmul.f32 %v1835, %v1823
        %v1838 = vadd.f32 %v1836, 1e-05
        %v1839 = vadd.f32 %v1837, 1e-05
        %v1840 = vrsqrt.pop %v1838
        %v1841 = vrsqrt.pop %v1839
        %v1842 = vmul.f32 %v1826, %v1840
        %v1843 = vmul.f32 %v1827, %v1841
        %v1844 = vlaneseq
        %v1845 = vshrl.u32 %v1844, 7
        %v1846 = vsub.s32 5, %v1845
        %v1847 = vrot.slane %v671, %v1846
        %v1848 = vmul.f32 %v1842, %v1847
        %v1849 = vmul.f32 %v1843, %v1847
        %v1850 = vlaneseq
        %v1851 = vshrl.u32 %v1850, 7
        %v1852 = vsub.s32 6, %v1851
        %v1853 = vrot.slane %v671, %v1852
        %v1854 = vadd.f32 %v1848, %v1853
        %v1855 = vadd.f32 %v1849, %v1853
        %v1856 = vpack.c.bf16 %v1855, %v1854
        %v1857 = vld [vmem:[%s563] sm:$0xf]
        %v1858 = vld [vmem:[%s563 + $0x4] sm:$0xf]
        %v1859 = vld [vmem:[%s563 + $0x8] sm:$0xf]
        %v1860 = vld [vmem:[%s563 + $0xc] sm:$0xf]
        %v1861 = vld [vmem:[%s589] sm:$0x1]
        %v1863 = vlaneseq
        %v1864 = vshrl.u32 %v1863, 7
        %v1865 = vsub.s32 0, %v1864
        %v1866 = vrot.slane %v1861, %v1865
        %v1872 = vunpack.c.l.b16 %v1857
        %v1873 = vunpack.c.l.b16 %v1858
        %v1874 = vunpack.c.l.b16 %v1859
        %v1875 = vunpack.c.l.b16 %v1860
        %v1876 = vpack.c.b16 %v1873, %v1872
        %v1877 = vpack.c.b16 %v1875, %v1874
        %v1881 = vsel %vm693, %v1856, 0
        %1883 = vmatprep.subr.bf16.mxu0 0
        %1884 = vmatpush1.bf16.msra.mxu0 %v1876
        %1885 = vmatprep.subr.bf16.mxu0 0
        %1886 = vmatpush1.bf16.msra.mxu0 %v1877
        %1887 = vmatprep.subr.bf16.mxu0 0
        %1888 = vmatpush1.bf16.msra.mxu0 0
        %1889 = vmatprep.subr.bf16.mxu0 0
        %1890 = vmatpush1.bf16.msra.mxu0 0
        %1891 = vmatprep.subr.bf16.mxu0 0
        %1892 = vmatpush1.bf16.msra.mxu0 0
        %1893 = vmatprep.subr.bf16.mxu0 0
        %1894 = vmatpush1.bf16.msra.mxu0 0
        %1895 = vmatprep.subr.bf16.mxu0 0
        %1896 = vmatpush1.bf16.msra.mxu0 0
        %1897 = vmatprep.subr.bf16.mxu0 0
        %1898 = vmatpush1.bf16.msra.mxu0 0
        %1899 = vmatprep.subr.bf16.mxu0 0
        %1900 = vmatpush1.bf16.msra.mxu0 0
        %1901 = vmatprep.subr.bf16.mxu0 0
        %1902 = vmatpush1.bf16.msra.mxu0 0
        %1903 = vmatprep.subr.bf16.mxu0 0
        %1904 = vmatpush1.bf16.msra.mxu0 0
        %1905 = vmatprep.subr.bf16.mxu0 0
        %1906 = vmatpush1.bf16.msra.mxu0 0
        %1907 = vmatprep.subr.bf16.mxu0 0
        %1908 = vmatpush1.bf16.msra.mxu0 0
        %1909 = vmatprep.subr.bf16.mxu0 0
        %1910 = vmatpush1.bf16.msra.mxu0 0
        %1911 = vmatprep.subr.bf16.mxu0 0
        %1912 = vmatpush1.bf16.msra.mxu0 0
        %1913 = vmatprep.subr.bf16.mxu0 0
        %1914 = vmatpush1.bf16.msra.mxu0 0
        %1915 = vmatprep.mubr.bf16.mxu0 0
        %1916 = vmatmul.mubr.bf16.gmra.mrb[0].mxu0 %v1881
        %v1917 = vpop.f32.mrb[0].mxu0
        %v1918 = vadd.f32 %v1866, %v1917
        %v1919 = vpop.f32.mrb[0].mxu0
        %v1920 = vpop.f32.mrb[0].mxu0
        %v1921 = vadd.f32 %v1866, %v1920
        %v1922 = vpop.f32.mrb[0].mxu0
        %1923 = vdwg.mxu0
        %v1924 = vmax.f32 %v1918, 0.0
        %v1925 = vmax.f32 %v1921, 0.0
        %v1926 = vpack.c.bf16 %v1925, %v1924
        %v1927 = vld [vmem:[%s572] sm:$0xf]
        %v1928 = vld [vmem:[%s572 + $0x4] sm:$0xf]
        %v1929 = vld [vmem:[%s572 + $0x8] sm:$0xf]
        %v1930 = vld [vmem:[%s572 + $0xc] sm:$0xf]
        %v1931 = vld [vmem:[%s572 + $0x10] sm:$0xf]
        %v1932 = vld [vmem:[%s572 + $0x14] sm:$0xf]
        %v1933 = vld [vmem:[%s572 + $0x18] sm:$0xf]
        %v1934 = vld [vmem:[%s572 + $0x1c] sm:$0xf]
        %v1935 = vlaneseq
        %v1936 = vshrl.u32 %v1935, 7
        %v1937 = vsub.s32 4, %v1936
        %v1938 = vrot.slane %v671, %v1937
        %v1947 = vunpack.c.l.b16 %v1927
        %v1948 = vunpack.c.l.b16 %v1928
        %v1949 = vunpack.c.l.b16 %v1929
        %v1950 = vunpack.c.l.b16 %v1930
        %v1951 = vunpack.c.l.b16 %v1931
        %v1952 = vunpack.c.l.b16 %v1932
        %v1953 = vunpack.c.l.b16 %v1933
        %v1954 = vunpack.c.l.b16 %v1934
        %v1955 = vpack.c.b16 %v1948, %v1947
        %v1956 = vpack.c.b16 %v1950, %v1949
        %v1957 = vpack.c.b16 %v1952, %v1951
        %v1958 = vpack.c.b16 %v1954, %v1953
        %vm1963 = vcmask 523264
        %v1965 = vsel %vm1963, %v1926, 0
        %1967 = vmatprep.subr.bf16.mxu0 0
        %1968 = vmatpush1.bf16.msra.mxu0 %v1955
        %1969 = vmatprep.subr.bf16.mxu0 0
        %1970 = vmatpush1.bf16.msra.mxu0 %v1956
        %1971 = vmatprep.subr.bf16.mxu0 0
        %1972 = vmatpush1.bf16.msra.mxu0 %v1957
        %1973 = vmatprep.subr.bf16.mxu0 0
        %1974 = vmatpush1.bf16.msra.mxu0 %v1958
        %1975 = vmatprep.subr.bf16.mxu0 0
        %1976 = vmatpush1.bf16.msra.mxu0 0
        %1977 = vmatprep.subr.bf16.mxu0 0
        %1978 = vmatpush1.bf16.msra.mxu0 0
        %1979 = vmatprep.subr.bf16.mxu0 0
        %1980 = vmatpush1.bf16.msra.mxu0 0
        %1981 = vmatprep.subr.bf16.mxu0 0
        %1982 = vmatpush1.bf16.msra.mxu0 0
        %1983 = vmatprep.subr.bf16.mxu0 0
        %1984 = vmatpush1.bf16.msra.mxu0 0
        %1985 = vmatprep.subr.bf16.mxu0 0
        %1986 = vmatpush1.bf16.msra.mxu0 0
        %1987 = vmatprep.subr.bf16.mxu0 0
        %1988 = vmatpush1.bf16.msra.mxu0 0
        %1989 = vmatprep.subr.bf16.mxu0 0
        %1990 = vmatpush1.bf16.msra.mxu0 0
        %1991 = vmatprep.subr.bf16.mxu0 0
        %1992 = vmatpush1.bf16.msra.mxu0 0
        %1993 = vmatprep.subr.bf16.mxu0 0
        %1994 = vmatpush1.bf16.msra.mxu0 0
        %1995 = vmatprep.subr.bf16.mxu0 0
        %1996 = vmatpush1.bf16.msra.mxu0 0
        %1997 = vmatprep.subr.bf16.mxu0 0
        %1998 = vmatpush1.bf16.msra.mxu0 0
        %1999 = vmatprep.mubr.bf16.mxu0 0
        %2000 = vmatmul.mubr.bf16.gmra.mrb[0].mxu0 %v1965
        %v2001 = vpop.f32.mrb[0].mxu0
        %v2002 = vadd.f32 %v1938, %v2001
        %v2003 = vpop.f32.mrb[0].mxu0
        %v2004 = vpop.f32.mrb[0].mxu0
        %v2005 = vadd.f32 %v1938, %v2004
        %v2006 = vpop.f32.mrb[0].mxu0
        %2007 = vdwg.mxu0
        %v2008 = vadd.f32 %v1854, %v2002
        %v2009 = vadd.f32 %v1855, %v2005
        %v2010 = vsel %vm693, %v2008, 0.0
        %2011 = vadd.xlane.f32.xlu0 %v2010
        %v2012 = vpop.xlane.xlu0 %2011
        %v2013 = vsel %vm693, %v2009, 0.0
        %2014 = vadd.xlane.f32.xlu0 %v2013
        %v2015 = vpop.xlane.xlu0 %2014
        %v2016 = vmul.f32 %v2012, %v1823
        %v2017 = vmul.f32 %v2015, %v1823
        %v2018 = vsub.f32 %v2008, %v2016
        %v2019 = vsub.f32 %v2009, %v2017
        %v2020 = vmul.f32 %v2018, %v2018
        %v2021 = vmul.f32 %v2019, %v2019
        %v2022 = vsel %vm693, %v2020, 0.0
        %2023 = vadd.xlane.f32.xlu0 %v2022
        %v2024 = vpop.xlane.xlu0 %2023
        %v2025 = vsel %vm693, %v2021, 0.0
        %2026 = vadd.xlane.f32.xlu0 %v2025
        %v2027 = vpop.xlane.xlu0 %2026
        %v2028 = vmul.f32 %v2024, %v1823
        %v2029 = vmul.f32 %v2027, %v1823
        %v2030 = vadd.f32 %v2028, 1e-05
        %v2031 = vadd.f32 %v2029, 1e-05
        %v2032 = vrsqrt.pop %v2030
        %v2033 = vrsqrt.pop %v2031
        %v2034 = vmul.f32 %v2018, %v2032
        %v2035 = vmul.f32 %v2019, %v2033
        %v2036 = vlaneseq
        %v2037 = vshrl.u32 %v2036, 7
        %v2038 = vsub.s32 7, %v2037
        %v2039 = vrot.slane %v671, %v2038
        %v2040 = vmul.f32 %v2034, %v2039
        %v2041 = vmul.f32 %v2035, %v2039
        %v2042 = vlaneseq
        %v2043 = vshrl.u32 %v2042, 7
        %v2044 = vsub.s32 0, %v2043
        %v2045 = vrot.slane %v672, %v2044
        %v2046 = vadd.f32 %v2040, %v2045
        %v2047 = vadd.f32 %v2041, %v2045
        %p2048 = scmp.ne.s32.totalorder %s29, 1
        // Predicated region
        $region105: #{tpu_custom_call.1} parent=59 // pred_check
          %p2049 = pneg %p2048
        $region106: #{tpu_custom_call.1} parent=59 // pred_check_branch
          %2051 = sbr.rel (%p2049) target = $region108
        $region107: #{tpu_custom_call.1} parent=59 // pred_region
          %2052 = vst.msk [vmem:[#allocation15] sm:$0xff] %vm693, %v2046
          %2053 = vst.msk [vmem:[#allocation15 + $0x8] sm:$0xff] %vm693, %v2047
        $region108: #{tpu_custom_call.1} parent=59 // pred_fallthru
          _
        %p2054 = scmp.eq.s32.totalorder %s29, 1
        // Predicated region
        $region109: #{tpu_custom_call.1} parent=59 // pred_check
          %p2055 = pneg %p2054
        $region110: #{tpu_custom_call.1} parent=59 // pred_check_branch
          %2057 = sbr.rel (%p2055) target = $region112
        $region111: #{tpu_custom_call.1} parent=59 // pred_region
          %v2058 = vld [vmem:[#allocation14] sm:$0x1]
          %v2059 = vld [vmem:[#allocation14 + $0x1] sm:$0x1]
          %v2060 = vsel %vm693, %v2046, 0.0
          %2061 = vadd.xlane.f32.xlu0 %v2060
          %v2062 = vpop.xlane.xlu0 %2061
          %v2063 = vsel %vm693, %v2047, 0.0
          %2064 = vadd.xlane.f32.xlu0 %v2063
          %v2065 = vpop.xlane.xlu0 %2064
          %v2066 = vmul.f32 %v2062, %v1823
          %v2067 = vmul.f32 %v2065, %v1823
          %v2068 = vsub.f32 %v2046, %v2066
          %v2069 = vsub.f32 %v2047, %v2067
          %v2070 = vmul.f32 %v2068, %v2068
          %v2071 = vmul.f32 %v2069, %v2069
          %v2072 = vsel %vm693, %v2070, 0.0
          %2073 = vadd.xlane.f32.xlu0 %v2072
          %v2074 = vpop.xlane.xlu0 %2073
          %v2075 = vsel %vm693, %v2071, 0.0
          %2076 = vadd.xlane.f32.xlu0 %v2075
          %v2077 = vpop.xlane.xlu0 %2076
          %v2078 = vmul.f32 %v2074, %v1823
          %v2079 = vmul.f32 %v2077, %v1823
          %v2080 = vadd.f32 %v2078, 1e-05
          %v2081 = vadd.f32 %v2079, 1e-05
          %v2082 = vrsqrt.pop %v2080
          %v2083 = vrsqrt.pop %v2081
          %v2084 = vmul.f32 %v2068, %v2082
          %v2085 = vmul.f32 %v2069, %v2083
          %v2086 = vlaneseq
          %v2087 = vshrl.u32 %v2086, 7
          %v2088 = vsub.s32 0, %v2087
          %v2089 = vrot.slane %v2058, %v2088
          %v2090 = vmul.f32 %v2084, %v2089
          %v2091 = vmul.f32 %v2085, %v2089
          %v2092 = vlaneseq
          %v2093 = vshrl.u32 %v2092, 7
          %v2094 = vsub.s32 0, %v2093
          %v2095 = vrot.slane %v2059, %v2094
          %v2096 = vadd.f32 %v2090, %v2095
          %v2097 = vadd.f32 %v2091, %v2095
          %2098 = vst.msk [vmem:[#allocation15] sm:$0xff] %vm693, %v2096
          %2099 = vst.msk [vmem:[#allocation15 + $0x8] sm:$0xff] %vm693, %v2097
        $region112: #{tpu_custom_call.1} parent=59 // pred_fallthru
          _
        // Predicated region
        $region113: #{tpu_custom_call.1} parent=59 // pred_check
          %p2100 = pneg %p309
        $region114: #{tpu_custom_call.1} parent=59 // pred_check_branch
          %2102 = sbr.rel (%p2100) target = $region116
        $region115: #{tpu_custom_call.1} parent=59 // pred_region
          %s2103 = smul.u32 2, %s28
          %s2105 = ssub.s32 256, 256
          %2106 = vsyncadd [#allocation4], %s2105
          %s2107 = smul.addr %s2103, 128
          %s2108 = scalar_lea.hbm %s10, %s2107
          %s2109 = sshll.u32 [#allocation15], 4
          %s2110 = int_to_ptr.vmem [resolvable:$true] %s2109
          %2115 = dma.vmem_to_hbm [thread:$0]  %s2110, 256, %s2108, [#allocation4], 128, 128, 8
        $region116: #{tpu_custom_call.1} parent=59 // pred_fallthru
          _
        // Predicated region
        $region117: #{tpu_custom_call.1} parent=59 // pred_check
          %p2116 = pneg %p309
        $region118: #{tpu_custom_call.1} parent=59 // pred_check_branch
          %2118 = sbr.rel (%p2116) target = $region120
        $region119: #{tpu_custom_call.1} parent=59 // pred_region
          %2119 = dma.done [#allocation4], 256
        $region120: #{tpu_custom_call.1} parent=59 // pred_fallthru
          _
      $region60: #{tpu_custom_call.1} parent=5 // pred_fallthru
        _
      %p2120 = scmp.le.s32.totalorder 2, %s19
      // Predicated region
      $region121: #{tpu_custom_call.1} parent=5 // pred_check
        %p2121 = pneg %p2120
      $region122: #{tpu_custom_call.1} parent=5 // pred_check_branch
        %2123 = sbr.rel (%p2121) target = $region124
      $region123: #{tpu_custom_call.1} parent=5 // pred_region
        %s2124 = ssub.s32 %s19, 2
      $region124: #{tpu_custom_call.1} parent=5 // pred_fallthru
        _
    $region6: #{tpu_custom_call.1} parent=1 // loop_footer
      %s23 = sadd.s32 1, %s19
    $region7: #{tpu_custom_call.1} parent=1 // loop_footer_branch
      %18 = sbr.rel target = $region3
    $region8: #{tpu_custom_call.1} parent=1 // loop_exit
      _
    %2125 = vsyncpa [#allocation3], 1
    %s2126 = scalar_lea.sflag [#allocation3], 1
    %2127 = vsyncpa %s2126, 1
    %2128 = vsyncpa [#allocation6], 1
    %2129 = vsyncpa [#allocation4], 1
    %s2130 = scalar_lea.sflag [#allocation4], 1
    %2131 = vsyncpa %s2130, 1

</llo_original>
